<compile_context>
chip_gen: v7x
topology: tpu7x:2x2x1
jax: 0.10.0
libtpu: 0.0.40
codegen_flags: <defaults>
</compile_context>

<pallas_src>
import jax
import jax.numpy as jnp
from jax import lax
from jax.experimental import pallas as pl
from jax.experimental.pallas import tpu as pltpu

LN_EPS = 1e-5
_LANES = 128


def _round_up(v, m):
    return (v + m - 1) // m * m


def _cdiv(a, b):
    return (a + b - 1) // b


def _query_vmem_capacity_bytes():
    try:
        info = pltpu.get_tpu_info()
        for attr in ("vmem_capacity_bytes", "vmem_bytes", "vmem_size_bytes"):
            v = getattr(info, attr, None)
            if v:
                return int(v)
    except Exception:
        pass
    return 64 * 1024 * 1024  # v7x physical VMEM: a safe lower bound on every generation


_VMEM_CAPACITY = _query_vmem_capacity_bytes()
# Scoped VMEM limit ~5/8 of physical: 80 MiB on 128 MiB chips (v5e/v6e), 40 MiB on v7x.
_VMEM_LIMIT = int(_VMEM_CAPACITY) * 5 // 8


def _pick_band(ho, wo, cp, cop, n, vmem_budget):
    """Output rows per band (TH) and number of bands (nb), sized from a VMEM budget.

    Remainder bands are allowed (nb = ceil(Ho / TH)); the last band's extra rows read
    zero padding and are sliced off in the wrapper, so awkward Ho does not degrade
    the band size.
    """
    per_row = (4 * 2 * cp * 2       # 4 parity-plane blocks, double-buffered, bf16
               + 2 * cop * 4        # output block, double-buffered, f32
               + 9 * cp * 2         # im2col scratch, bf16
               + 4 * cop * 4)       # f32 matmul result + LayerNorm temporaries
    fixed = 2 * 9 * cp * cop * 2 + 4 * 2 * cop * 4   # weights (2 bufs) + gamma/beta
    rows = max(1, (vmem_budget - fixed) // per_row)
    th = max(1, min(ho, rows // (wo + 1)))
    nb = _cdiv(ho, th)
    # v7x has 2 TensorCores per chip: expose at least 2 parallel grid iterations.
    if n * nb < 2 and ho > 1:
        nb = 2
        th = _cdiv(ho, nb)
        nb = _cdiv(ho, th)
    return th, nb


@jax.jit
def conv_downsampler(x, w_conv, gamma, beta):
    """Fused Conv2d(C -> CO, 3x3, stride 2, pad 1, no bias) + LayerNorm(CO).

    x:      (N, H, W, C) float32, NHWC (the layout the PyTorch module receives).
    w_conv: (CO, C, 3, 3) float32, PyTorch OIHW conv weight (CO = 2*C in the module).
    gamma, beta: (CO,) LayerNorm affine parameters.
    returns (N, Ho, Wo, CO) float32.
    """
    N, H, W, C = x.shape
    CO = w_conv.shape[0]
    Ho = (H - 1) // 2 + 1
    Wo = (W - 1) // 2 + 1

    Cp = _round_up(C, _LANES)       # lane-dense input channels
    COp = _round_up(CO, _LANES)     # lane-dense output channels

    TH, nb = _pick_band(Ho, Wo, Cp, COp, N, _VMEM_LIMIT * 4 // 5)
    L = TH * (Wo + 1)               # matmul rows per band (one junk col per output row)
    Lp = (TH + 2) * (Wo + 1)        # plane rows per band (incl. 2-row halo)
    Hrows = nb * TH                 # >= Ho; extra rows are sliced off afterwards

    # ---- four stride-2 parity planes of the zero-padded, channel-padded bf16 input ----
    # P[ph][pw][n, j, k, c] = x_pad[n, 2j+ph, 2k+pw, c]; conv tap (kh, kw) for output
    # pixel (r, w) reads P[kh%2][kw%2][r + kh//2, w + kw//2].  Bottom/right zero padding
    # only gives the planes a uniform shape; it is never referenced by real output pixels.
    Hpad = 2 * (Hrows + 2)
    Wpad = 2 * (Wo + 1)
    x_p = jnp.pad(x.astype(jnp.bfloat16),
                  ((0, 0), (1, Hpad - H - 1), (1, Wpad - W - 1), (0, Cp - C)))
    planes = []
    for ph in range(2):
        for pw in range(2):
            p = x_p[:, ph::2, pw::2, :]                          # (N, Hrows+2, Wo+1, Cp)
            bands = jnp.stack(
                [p[:, hb * TH:hb * TH + TH + 2] for hb in range(nb)], axis=1
            )                                                    # (N, nb, TH+2, Wo+1, Cp)
            planes.append(bands.reshape(N, nb, Lp, Cp))

    # conv weight OIHW -> (kh, kw, ci, co) -> zero-pad channels -> (9*Cp, COp), bf16.
    w_t = jnp.transpose(w_conv, (2, 3, 1, 0))
    w_t = jnp.pad(w_t, ((0, 0), (0, 0), (0, Cp - C), (0, COp - CO)))
    w2 = w_t.reshape(9 * Cp, COp).astype(jnp.bfloat16)

    gamma2 = jnp.pad(gamma.astype(jnp.float32), (0, COp - CO)).reshape(1, COp)
    beta2 = jnp.pad(beta.astype(jnp.float32), (0, COp - CO)).reshape(1, COp)

    inv_co = float(1.0 / CO)        # LN statistics are over the REAL CO channels

    def kernel(p00, p01, p10, p11, w_ref, g_ref, b_ref, o_ref, im_ref):
        prefs = (p00, p01, p10, p11)
        # Gather the 9 taps into a lane-aligned (L, 9*Cp) im2col scratch.  Each tap is
        # a contiguous slice of a parity plane; destinations start at multiples of 128
        # lanes, so the stores are unmasked.  (Two of the four sublane offsets are
        # off-by-one from 8-alignment; Mosaic handles them with masked loads and the
        # halo rows absorb any wrap, so we keep the simple contiguous-slice gather.)
        for kh in range(3):
            for kw in range(3):
                t = kh * 3 + kw
                pr = prefs[(kh % 2) * 2 + (kw % 2)]
                off = (kh // 2) * (Wo + 1) + (kw // 2)
                im_ref[:, t * Cp:(t + 1) * Cp] = pr[0, 0, off:off + L, :]
        # One K = 9*Cp MXU matmul per band, f32 accumulation.
        acc = jnp.dot(im_ref[...], w_ref[...], preferred_element_type=jnp.float32)
        # Fused LayerNorm over channels.  Padded channels of acc are exactly zero, so
        # full-width sums equal the real-CO sums; divide by the real CO.
        s1 = jnp.sum(acc, axis=-1, keepdims=True)
        s2 = jnp.sum(acc * acc, axis=-1, keepdims=True)
        mean = s1 * inv_co
        var = jnp.maximum(s2 * inv_co - mean * mean, 0.0)   # clamp f32 cancellation
        y = (acc - mean) * lax.rsqrt(var + LN_EPS)
        # Single lane-dense block store; junk column / padded channels dropped outside.
        o_ref[0, 0] = (y * g_ref[...] + b_ref[...]).astype(o_ref.dtype)

    plane_spec = pl.BlockSpec((1, 1, Lp, Cp), lambda n, hb: (n, hb, 0, 0))
    flops = 2 * N * nb * L * (9 * Cp) * COp
    bytes_accessed = (4 * N * nb * Lp * Cp * 2 + 9 * Cp * COp * 2 + 2 * COp * 4
                      + N * nb * L * COp * 4)
    cost = pl.CostEstimate(flops=flops, transcendentals=N * nb * L,
                           bytes_accessed=bytes_accessed)

    out = pl.pallas_call(
        kernel,
        out_shape=jax.ShapeDtypeStruct((N, nb, L, COp), jnp.float32),
        grid_spec=pltpu.PrefetchScalarGridSpec(
            num_scalar_prefetch=0,
            grid=(N, nb),
            in_specs=[
                plane_spec, plane_spec, plane_spec, plane_spec,
                # constant index maps: weights / LN params stay VMEM-resident
                pl.BlockSpec((9 * Cp, COp), lambda n, hb: (0, 0)),
                pl.BlockSpec((1, COp), lambda n, hb: (0, 0)),
                pl.BlockSpec((1, COp), lambda n, hb: (0, 0)),
            ],
            out_specs=pl.BlockSpec((1, 1, L, COp), lambda n, hb: (n, hb, 0, 0)),
            scratch_shapes=[pltpu.VMEM((L, 9 * Cp), jnp.bfloat16)],
        ),
        compiler_params=pltpu.CompilerParams(
            dimension_semantics=("parallel", "parallel"),
            vmem_limit_bytes=int(_VMEM_LIMIT),
        ),
        cost_estimate=cost,
    )(planes[0], planes[1], planes[2], planes[3], w2, gamma2, beta2)

    # Drop the junk column, padded rows and padded channels (one fused XLA slice).
    out = out.reshape(N, Hrows, Wo + 1, COp)[:, :Ho, :Wo, :CO]
    return out


def _reference(x, w_conv, gamma, beta):
    # pure-JAX reference (f32 conv + LayerNorm)
    w_hwio = jnp.transpose(w_conv, (2, 3, 1, 0))  # (3,3,C,CO)
    y = lax.conv_general_dilated(
        x, w_hwio, window_strides=(2, 2), padding=((1, 1), (1, 1)),
        dimension_numbers=("NHWC", "HWIO", "NHWC"))
    mean = jnp.mean(y, axis=-1, keepdims=True)
    var = jnp.mean(jnp.square(y - mean), axis=-1, keepdims=True)
    return (y - mean) * lax.rsqrt(var + LN_EPS) * gamma + beta


if __name__ == "__main__":
    dim = 4
    N, H, W = 2, 16, 16

    key = jax.random.PRNGKey(0)
    kx, kw, kg, kb = jax.random.split(key, 4)

    x = jax.random.normal(kx, (N, H, W, dim), dtype=jnp.float32)
    # Conv2d(dim, 2*dim, 3, stride=2, padding=1, bias=False) weight: (2*dim, dim, 3, 3)
    w_conv = jax.random.normal(kw, (2 * dim, dim, 3, 3), dtype=jnp.float32) * 0.1
    gamma = 1.0 + 0.1 * jax.random.normal(kg, (2 * dim,), dtype=jnp.float32)
    beta = 0.1 * jax.random.normal(kb, (2 * dim,), dtype=jnp.float32)

    out = conv_downsampler(x, w_conv, gamma, beta)
    out = jax.block_until_ready(out)

    # Compare against the reference evaluated on the same bf16-rounded operands the
    # kernel consumes (the kernel accumulates in f32, so this comparison is tight).
    x_r = x.astype(jnp.bfloat16).astype(jnp.float32)
    w_r = w_conv.astype(jnp.bfloat16).astype(jnp.float32)
    ref = _reference(x_r, w_r, gamma, beta)

    assert out.shape == (N, H // 2, W // 2, 2 * dim), out.shape
    max_err = float(jnp.max(jnp.abs(out - ref)))
    assert jnp.allclose(out, ref, atol=1e-2, rtol=1e-2), max_err

    print("KERNEL_OK")
</pallas_src>

<mosaic_0001>
module attributes {stable_mosaic.version = 11 : i64} {
  func.func @kernel(%arg0: i32, %arg1: i32, %arg2: memref<1x1x90x128xbf16, #tpu.memory_space<vmem>>, %arg3: memref<1x1x90x128xbf16, #tpu.memory_space<vmem>>, %arg4: memref<1x1x90x128xbf16, #tpu.memory_space<vmem>>, %arg5: memref<1x1x90x128xbf16, #tpu.memory_space<vmem>>, %arg6: memref<1152x128xbf16, #tpu.memory_space<vmem>>, %arg7: memref<1x128xf32, #tpu.memory_space<vmem>>, %arg8: memref<1x128xf32, #tpu.memory_space<vmem>>, %arg9: memref<1x1x72x128xf32, #tpu.memory_space<vmem>>, %arg10: memref<72x1152xbf16, #tpu.memory_space<vmem>>) attributes {dimension_semantics = [#tpu.dimension_semantics<parallel>, #tpu.dimension_semantics<parallel>], iteration_bounds = array<i64: 2, 1>, scalar_prefetch = 0 : i64, scratch_operands = 1 : i64, tpu.core_type = #tpu.core_type<tc>, window_params = [{transform_indices = @transform_0, window_bounds = array<i64: 1, 1, 90, 128>}, {transform_indices = @transform_1, window_bounds = array<i64: 1, 1, 90, 128>}, {transform_indices = @transform_2, window_bounds = array<i64: 1, 1, 90, 128>}, {transform_indices = @transform_3, window_bounds = array<i64: 1, 1, 90, 128>}, {pipeline_mode = #tpu.pipeline_mode<synchronous>, transform_indices = @transform_4, window_bounds = array<i64: 1152, 128>}, {pipeline_mode = #tpu.pipeline_mode<synchronous>, transform_indices = @transform_5, window_bounds = array<i64: 1, 128>}, {pipeline_mode = #tpu.pipeline_mode<synchronous>, transform_indices = @transform_6, window_bounds = array<i64: 1, 128>}, {transform_indices = @transform_7, window_bounds = array<i64: 1, 1, 72, 128>}]} {
    %c0 = arith.constant 0 : index
    %c0_0 = arith.constant 0 : index
    %c0_1 = arith.constant 0 : index
    %c0_2 = arith.constant 0 : index
    %0 = vector.load %arg2[%c0, %c0_0, %c0_1, %c0_2] : memref<1x1x90x128xbf16, #tpu.memory_space<vmem>>, vector<1x1x72x128xbf16>
    %1 = vector.shape_cast %0 : vector<1x1x72x128xbf16> to vector<72x128xbf16>
    %c0_3 = arith.constant 0 : index
    %c0_4 = arith.constant 0 : index
    %2 = vector.load %arg10[%c0_3, %c0_4] : memref<72x1152xbf16, #tpu.memory_space<vmem>>, vector<72x128xbf16>
    tpu.vector_store %arg10[%c0_3, %c0_4], %1 {strides = array<i32>} : memref<72x1152xbf16, #tpu.memory_space<vmem>>, vector<72x128xbf16>,
    %c0_5 = arith.constant 0 : index
    %c0_6 = arith.constant 0 : index
    %c0_7 = arith.constant 0 : index
    %c0_8 = arith.constant 0 : index
    %3 = vector.load %arg3[%c0_5, %c0_6, %c0_7, %c0_8] : memref<1x1x90x128xbf16, #tpu.memory_space<vmem>>, vector<1x1x72x128xbf16>
    %4 = vector.shape_cast %3 : vector<1x1x72x128xbf16> to vector<72x128xbf16>
    %c0_9 = arith.constant 0 : index
    %c128 = arith.constant 128 : index
    %5 = vector.load %arg10[%c0_9, %c128] : memref<72x1152xbf16, #tpu.memory_space<vmem>>, vector<72x128xbf16>
    tpu.vector_store %arg10[%c0_9, %c128], %4 {strides = array<i32>} : memref<72x1152xbf16, #tpu.memory_space<vmem>>, vector<72x128xbf16>,
    %c0_10 = arith.constant 0 : index
    %c0_11 = arith.constant 0 : index
    %c1 = arith.constant 1 : index
    %c0_12 = arith.constant 0 : index
    %6 = vector.load %arg2[%c0_10, %c0_11, %c1, %c0_12] : memref<1x1x90x128xbf16, #tpu.memory_space<vmem>>, vector<1x1x72x128xbf16>
    %7 = vector.shape_cast %6 : vector<1x1x72x128xbf16> to vector<72x128xbf16>
    %c0_13 = arith.constant 0 : index
    %c256 = arith.constant 256 : index
    %8 = vector.load %arg10[%c0_13, %c256] : memref<72x1152xbf16, #tpu.memory_space<vmem>>, vector<72x128xbf16>
    tpu.vector_store %arg10[%c0_13, %c256], %7 {strides = array<i32>} : memref<72x1152xbf16, #tpu.memory_space<vmem>>, vector<72x128xbf16>,
    %c0_14 = arith.constant 0 : index
    %c0_15 = arith.constant 0 : index
    %c0_16 = arith.constant 0 : index
    %c0_17 = arith.constant 0 : index
    %9 = vector.load %arg4[%c0_14, %c0_15, %c0_16, %c0_17] : memref<1x1x90x128xbf16, #tpu.memory_space<vmem>>, vector<1x1x72x128xbf16>
    %10 = vector.shape_cast %9 : vector<1x1x72x128xbf16> to vector<72x128xbf16>
    %c0_18 = arith.constant 0 : index
    %c384 = arith.constant 384 : index
    %11 = vector.load %arg10[%c0_18, %c384] : memref<72x1152xbf16, #tpu.memory_space<vmem>>, vector<72x128xbf16>
    tpu.vector_store %arg10[%c0_18, %c384], %10 {strides = array<i32>} : memref<72x1152xbf16, #tpu.memory_space<vmem>>, vector<72x128xbf16>,
    %c0_19 = arith.constant 0 : index
    %c0_20 = arith.constant 0 : index
    %c0_21 = arith.constant 0 : index
    %c0_22 = arith.constant 0 : index
    %12 = vector.load %arg5[%c0_19, %c0_20, %c0_21, %c0_22] : memref<1x1x90x128xbf16, #tpu.memory_space<vmem>>, vector<1x1x72x128xbf16>
    %13 = vector.shape_cast %12 : vector<1x1x72x128xbf16> to vector<72x128xbf16>
    %c0_23 = arith.constant 0 : index
    %c512 = arith.constant 512 : index
    %14 = vector.load %arg10[%c0_23, %c512] : memref<72x1152xbf16, #tpu.memory_space<vmem>>, vector<72x128xbf16>
    tpu.vector_store %arg10[%c0_23, %c512], %13 {strides = array<i32>} : memref<72x1152xbf16, #tpu.memory_space<vmem>>, vector<72x128xbf16>,
    %c0_24 = arith.constant 0 : index
    %c0_25 = arith.constant 0 : index
    %c1_26 = arith.constant 1 : index
    %c0_27 = arith.constant 0 : index
    %15 = vector.load %arg4[%c0_24, %c0_25, %c1_26, %c0_27] : memref<1x1x90x128xbf16, #tpu.memory_space<vmem>>, vector<1x1x72x128xbf16>
    %16 = vector.shape_cast %15 : vector<1x1x72x128xbf16> to vector<72x128xbf16>
    %c0_28 = arith.constant 0 : index
    %c640 = arith.constant 640 : index
    %17 = vector.load %arg10[%c0_28, %c640] : memref<72x1152xbf16, #tpu.memory_space<vmem>>, vector<72x128xbf16>
    tpu.vector_store %arg10[%c0_28, %c640], %16 {strides = array<i32>} : memref<72x1152xbf16, #tpu.memory_space<vmem>>, vector<72x128xbf16>,
    %c0_29 = arith.constant 0 : index
    %c0_30 = arith.constant 0 : index
    %c9 = arith.constant 9 : index
    %c0_31 = arith.constant 0 : index
    %18 = vector.load %arg2[%c0_29, %c0_30, %c9, %c0_31] : memref<1x1x90x128xbf16, #tpu.memory_space<vmem>>, vector<1x1x72x128xbf16>
    %19 = vector.shape_cast %18 : vector<1x1x72x128xbf16> to vector<72x128xbf16>
    %c0_32 = arith.constant 0 : index
    %c768 = arith.constant 768 : index
    %20 = vector.load %arg10[%c0_32, %c768] : memref<72x1152xbf16, #tpu.memory_space<vmem>>, vector<72x128xbf16>
    tpu.vector_store %arg10[%c0_32, %c768], %19 {strides = array<i32>} : memref<72x1152xbf16, #tpu.memory_space<vmem>>, vector<72x128xbf16>,
    %c0_33 = arith.constant 0 : index
    %c0_34 = arith.constant 0 : index
    %c9_35 = arith.constant 9 : index
    %c0_36 = arith.constant 0 : index
    %21 = vector.load %arg3[%c0_33, %c0_34, %c9_35, %c0_36] : memref<1x1x90x128xbf16, #tpu.memory_space<vmem>>, vector<1x1x72x128xbf16>
    %22 = vector.shape_cast %21 : vector<1x1x72x128xbf16> to vector<72x128xbf16>
    %c0_37 = arith.constant 0 : index
    %c896 = arith.constant 896 : index
    %23 = vector.load %arg10[%c0_37, %c896] : memref<72x1152xbf16, #tpu.memory_space<vmem>>, vector<72x128xbf16>
    tpu.vector_store %arg10[%c0_37, %c896], %22 {strides = array<i32>} : memref<72x1152xbf16, #tpu.memory_space<vmem>>, vector<72x128xbf16>,
    %c0_38 = arith.constant 0 : index
    %c0_39 = arith.constant 0 : index
    %c10 = arith.constant 10 : index
    %c0_40 = arith.constant 0 : index
    %24 = vector.load %arg2[%c0_38, %c0_39, %c10, %c0_40] : memref<1x1x90x128xbf16, #tpu.memory_space<vmem>>, vector<1x1x72x128xbf16>
    %25 = vector.shape_cast %24 : vector<1x1x72x128xbf16> to vector<72x128xbf16>
    %c0_41 = arith.constant 0 : index
    %c1024 = arith.constant 1024 : index
    %26 = vector.load %arg10[%c0_41, %c1024] : memref<72x1152xbf16, #tpu.memory_space<vmem>>, vector<72x128xbf16>
    tpu.vector_store %arg10[%c0_41, %c1024], %25 {strides = array<i32>} : memref<72x1152xbf16, #tpu.memory_space<vmem>>, vector<72x128xbf16>,
    %c0_42 = arith.constant 0 : index
    %c0_43 = arith.constant 0 : index
    %27 = vector.load %arg10[%c0_42, %c0_43] : memref<72x1152xbf16, #tpu.memory_space<vmem>>, vector<72x1152xbf16>
    %c0_44 = arith.constant 0 : index
    %c0_45 = arith.constant 0 : index
    %28 = vector.load %arg6[%c0_44, %c0_45] : memref<1152x128xbf16, #tpu.memory_space<vmem>>, vector<1152x128xbf16>
    %cst = arith.constant dense<0.000000e+00> : vector<72x128xf32>
    %29 = tpu.matmul %27, %28, %cst {dimension_numbers = #tpu.dot_dimension_numbers<[1], [0], [0], [1], [0, 0, 1, 1], [], []>} : vector<72x1152xbf16>, vector<1152x128xbf16>, vector<72x128xf32> -> vector<72x128xf32>
    %cst_46 = arith.constant dense<0.000000e+00> : vector<72xf32>
    %30 = vector.multi_reduction <add>, %29, %cst_46 [1] : vector<72x128xf32> to vector<72xf32>
    %31 = vector.shape_cast %30 : vector<72xf32> to vector<72x1xf32>
    %32 = arith.mulf %29, %29 : vector<72x128xf32>
    %cst_47 = arith.constant dense<0.000000e+00> : vector<72xf32>
    %33 = vector.multi_reduction <add>, %32, %cst_47 [1] : vector<72x128xf32> to vector<72xf32>
    %34 = vector.shape_cast %33 : vector<72xf32> to vector<72x1xf32>
    %cst_48 = arith.constant 1.250000e-01 : f32
    %35 = vector.broadcast %cst_48 : f32 to vector<72x1xf32>
    %36 = arith.mulf %31, %35 : vector<72x1xf32>
    %cst_49 = arith.constant 1.250000e-01 : f32
    %37 = vector.broadcast %cst_49 : f32 to vector<72x1xf32>
    %38 = arith.mulf %34, %37 : vector<72x1xf32>
    %39 = arith.mulf %36, %36 : vector<72x1xf32>
    %40 = arith.subf %38, %39 : vector<72x1xf32>
    %cst_50 = arith.constant 0.000000e+00 : f32
    %41 = vector.broadcast %cst_50 : f32 to vector<72x1xf32>
    %42 = arith.maximumf %40, %41 : vector<72x1xf32>
    %43 = vector.broadcast %36 : vector<72x1xf32> to vector<72x128xf32>
    %44 = arith.subf %29, %43 : vector<72x128xf32>
    %cst_51 = arith.constant 9.99999974E-6 : f32
    %45 = vector.broadcast %cst_51 : f32 to vector<72x1xf32>
    %46 = arith.addf %42, %45 : vector<72x1xf32>
    %47 = math.rsqrt %46 : vector<72x1xf32>
    %48 = vector.broadcast %47 : vector<72x1xf32> to vector<72x128xf32>
    %49 = arith.mulf %44, %48 : vector<72x128xf32>
    %c0_52 = arith.constant 0 : index
    %c0_53 = arith.constant 0 : index
    %50 = vector.load %arg7[%c0_52, %c0_53] : memref<1x128xf32, #tpu.memory_space<vmem>>, vector<1x128xf32>
    %51 = vector.broadcast %50 : vector<1x128xf32> to vector<72x128xf32>
    %52 = arith.mulf %49, %51 : vector<72x128xf32>
    %c0_54 = arith.constant 0 : index
    %c0_55 = arith.constant 0 : index
    %53 = vector.load %arg8[%c0_54, %c0_55] : memref<1x128xf32, #tpu.memory_space<vmem>>, vector<1x128xf32>
    %54 = vector.broadcast %53 : vector<1x128xf32> to vector<72x128xf32>
    %55 = arith.addf %52, %54 : vector<72x128xf32>
    %c0_56 = arith.constant 0 : index
    %c0_57 = arith.constant 0 : index
    %c0_58 = arith.constant 0 : index
    %c0_59 = arith.constant 0 : index
    %56 = vector.load %arg9[%c0_56, %c0_57, %c0_58, %c0_59] : memref<1x1x72x128xf32, #tpu.memory_space<vmem>>, vector<1x1x72x128xf32>
    %57 = vector.shape_cast %56 : vector<1x1x72x128xf32> to vector<72x128xf32>
    %58 = vector.shape_cast %55 : vector<72x128xf32> to vector<1x1x72x128xf32>
    tpu.vector_store %arg9[%c0_56, %c0_57, %c0_58, %c0_59], %58 {strides = array<i32>} : memref<1x1x72x128xf32, #tpu.memory_space<vmem>>, vector<1x1x72x128xf32>,
    return
  }
  func.func @transform_0(%arg0: i32, %arg1: i32) -> (i32, i32, i32, i32) {
    %c0_i32 = arith.constant 0 : i32
    %c0_i32_0 = arith.constant 0 : i32
    %c0_i32_1 = arith.constant 0 : i32
    return %arg0, %arg1, %c0_i32, %c0_i32_0 : i32, i32, i32, i32
  }
  func.func @transform_1(%arg0: i32, %arg1: i32) -> (i32, i32, i32, i32) {
    %c0_i32 = arith.constant 0 : i32
    %c0_i32_0 = arith.constant 0 : i32
    %c0_i32_1 = arith.constant 0 : i32
    return %arg0, %arg1, %c0_i32, %c0_i32_0 : i32, i32, i32, i32
  }
  func.func @transform_2(%arg0: i32, %arg1: i32) -> (i32, i32, i32, i32) {
    %c0_i32 = arith.constant 0 : i32
    %c0_i32_0 = arith.constant 0 : i32
    %c0_i32_1 = arith.constant 0 : i32
    return %arg0, %arg1, %c0_i32, %c0_i32_0 : i32, i32, i32, i32
  }
  func.func @transform_3(%arg0: i32, %arg1: i32) -> (i32, i32, i32, i32) {
    %c0_i32 = arith.constant 0 : i32
    %c0_i32_0 = arith.constant 0 : i32
    %c0_i32_1 = arith.constant 0 : i32
    return %arg0, %arg1, %c0_i32, %c0_i32_0 : i32, i32, i32, i32
  }
  func.func @transform_4(%arg0: i32, %arg1: i32) -> (i32, i32) {
    %c0_i32 = arith.constant 0 : i32
    %c0_i32_0 = arith.constant 0 : i32
    %c0_i32_1 = arith.constant 0 : i32
    return %c0_i32, %c0_i32_0 : i32, i32
  }
  func.func @transform_5(%arg0: i32, %arg1: i32) -> (i32, i32) {
    %c0_i32 = arith.constant 0 : i32
    %c0_i32_0 = arith.constant 0 : i32
    %c0_i32_1 = arith.constant 0 : i32
    return %c0_i32, %c0_i32_0 : i32, i32
  }
  func.func @transform_6(%arg0: i32, %arg1: i32) -> (i32, i32) {
    %c0_i32 = arith.constant 0 : i32
    %c0_i32_0 = arith.constant 0 : i32
    %c0_i32_1 = arith.constant 0 : i32
    return %c0_i32, %c0_i32_0 : i32, i32
  }
  func.func @transform_7(%arg0: i32, %arg1: i32) -> (i32, i32, i32, i32) {
    %c0_i32 = arith.constant 0 : i32
    %c0_i32_0 = arith.constant 0 : i32
    %c0_i32_1 = arith.constant 0 : i32
    return %arg0, %arg1, %c0_i32, %c0_i32_0 : i32, i32, i32, i32
  }
}

</mosaic_0001>

<llo_original>
// kernel: conv_downsampler.1
$region0: #{conv_downsampler.1}
  #allocation0 [shape = 'u32[]', space=smem, size = 0x4, offset = 0x4, fixed_abs, tag = 'smem constant byte address 0x4 - core index']
  #allocation1 [shape = 'u32[144,128]{1,0:T(1,128)}', space=vmem, size = 0x12000, scoped, tag = 'internal scratch']
  #allocation2 [shape = 'bf16[72,1152]{1,0:T(8,128)(2,1)}', space=vmem, size = 0x28800, scoped, tag = 'scratch operand']
  %s0 = inlined_call_operand.vmem [shape: bf16[2,1,90,128], index: 0, kind: input, shape index: {}]
  %s1 = inlined_call_operand.vmem [shape: bf16[2,1,90,128], index: 1, kind: input, shape index: {}]
  %s2 = inlined_call_operand.vmem [shape: bf16[2,1,90,128], index: 2, kind: input, shape index: {}]
  %s3 = inlined_call_operand.vmem [shape: bf16[2,1,90,128], index: 3, kind: input, shape index: {}]
  %s4 = inlined_call_operand.vmem [shape: bf16[1152,128], index: 4, kind: input, shape index: {}]
  %s5 = inlined_call_operand.vmem [shape: f32[1,128], index: 5, kind: input, shape index: {}]
  %s6 = inlined_call_operand.vmem [shape: f32[1,128], index: 6, kind: input, shape index: {}]
  %s7 = inlined_call_operand.vmem [shape: f32[2,1,72,128], index: 7, kind: output, shape index: {}]
  %s8 = sld [smem:[#allocation0]]
  $region61: #{conv_downsampler.1} parent=0
    _
  %s10 = ssub.s32 1, %s8
  %s11 = scalar_select 0, %s10, %s8
  loop: start=0, step=1, limit=4
  $region2: #{conv_downsampler.1} parent=0 // loop_pre_header
    _
  $region3: #{conv_downsampler.1} parent=0 // loop_header
    %s13 = sphi 0, %s17
    %p14 = scmp.ge.s32.totalorder %s13, 4
    %s20 = sphi 0, %s32
    %s21 = sphi 0, %s28
    %s22 = sphi 0, %s20
    %s23 = sphi 0, %s21
    %s24 = sphi 0, %s22
    %s25 = sphi 0, %s23
    %s37 = sphi 0, %s39
    %s40 = sphi 0, %s37
    %s41 = sphi 0, %s40
    %s57 = sphi 0, %s41
    %s65 = sphi 0, %s67
    %s68 = sphi 0, %s65
    %s69 = sphi 0, %s68
    %s85 = sphi 0, %s69
    %s93 = sphi 0, %s95
    %s96 = sphi 0, %s93
    %s97 = sphi 0, %s96
    %s113 = sphi 0, %s97
    %s121 = sphi 0, %s123
    %s124 = sphi 0, %s121
    %s125 = sphi 0, %s124
    %s141 = sphi 0, %s125
    %s145 = sphi 0, %s145
    %s147 = sphi 0, %s145
    %s148 = sphi 0, %s147
    %s162 = sphi 0, %s148
    %s166 = sphi 0, %s166
    %s168 = sphi 0, %s166
    %s169 = sphi 0, %s168
    %s183 = sphi 0, %s169
    %s187 = sphi 0, %s187
    %s189 = sphi 0, %s187
    %s190 = sphi 0, %s189
    %s204 = sphi 0, %s190
    %s212 = sphi 0, %s214
    %s215 = sphi 0, %s212
    %s216 = sphi 0, %s215
    %s232 = sphi 0, %s216
  $region4: #{conv_downsampler.1} parent=0 // loop_header_branch
    %16 = sbr.rel (%p14) target = $region8
  $region5: #{conv_downsampler.1} parent=0 // loop_body
    %s18 = ssub.s32 %s13, 1
    %s19 = ssub.s32 %s13, 2
    %s26 = sadd.s32 1, %s21
    %p27 = scmp.ge.s32.totalorder %s26, 1
    %s28 = scalar_select %p27, 0, %s26
    %s29 = sadd.s32 1, %s20
    %s30 = scalar_select %p27, %s29, %s20
    %p31 = scmp.ge.s32.totalorder %s30, 2
    %s32 = scalar_select %p31, 0, %s30
    %s33 = ssub.s32 %s20, %s32
    %s34 = ssub.s32 %s21, %s28
    %s35 = sor.u32 %s33, %s34
    %p36 = scmp.eq.s32.totalorder %s35, 0
    %s38 = sadd.s32 %s37, 1
    %s39 = scalar_select %p36, %s37, %s38
    %p42 = pneg %p36
    %p43 = scmp.eq.s32.totalorder %s13, 1
    %p44 = por %p42, %p43
    %p45 = scmp.ne.s32.totalorder %s37, %s40
    %p46 = scmp.eq.s32.totalorder %s13, 0
    %p47 = por %p45, %p46
    %p48 = scmp.ne.s32.totalorder %s37, %s40
    %p49 = scmp.eq.s32.totalorder %s18, 1
    %p50 = por %p48, %p49
    %p51 = scmp.ne.s32.totalorder %s40, %s41
    %p52 = scmp.eq.s32.totalorder %s18, 0
    %p53 = por %p51, %p52
    %p54 = scmp.ne.s32.totalorder %s40, %s41
    %p55 = scmp.eq.s32.totalorder %s19, 1
    %p56 = por %p54, %p55
    %p58 = scmp.ne.s32.totalorder %s41, %s57
    %p59 = scmp.eq.s32.totalorder %s19, 0
    %p60 = por %p58, %p59
    %s61 = ssub.s32 %s20, %s32
    %s62 = ssub.s32 %s21, %s28
    %s63 = sor.u32 %s61, %s62
    %p64 = scmp.eq.s32.totalorder %s63, 0
    %s66 = sadd.s32 %s65, 1
    %s67 = scalar_select %p64, %s65, %s66
    %p70 = pneg %p64
    %p71 = scmp.eq.s32.totalorder %s13, 1
    %p72 = por %p70, %p71
    %p73 = scmp.ne.s32.totalorder %s65, %s68
    %p74 = scmp.eq.s32.totalorder %s13, 0
    %p75 = por %p73, %p74
    %p76 = scmp.ne.s32.totalorder %s65, %s68
    %p77 = scmp.eq.s32.totalorder %s18, 1
    %p78 = por %p76, %p77
    %p79 = scmp.ne.s32.totalorder %s68, %s69
    %p80 = scmp.eq.s32.totalorder %s18, 0
    %p81 = por %p79, %p80
    %p82 = scmp.ne.s32.totalorder %s68, %s69
    %p83 = scmp.eq.s32.totalorder %s19, 1
    %p84 = por %p82, %p83
    %p86 = scmp.ne.s32.totalorder %s69, %s85
    %p87 = scmp.eq.s32.totalorder %s19, 0
    %p88 = por %p86, %p87
    %s89 = ssub.s32 %s20, %s32
    %s90 = ssub.s32 %s21, %s28
    %s91 = sor.u32 %s89, %s90
    %p92 = scmp.eq.s32.totalorder %s91, 0
    %s94 = sadd.s32 %s93, 1
    %s95 = scalar_select %p92, %s93, %s94
    %p98 = pneg %p92
    %p99 = scmp.eq.s32.totalorder %s13, 1
    %p100 = por %p98, %p99
    %p101 = scmp.ne.s32.totalorder %s93, %s96
    %p102 = scmp.eq.s32.totalorder %s13, 0
    %p103 = por %p101, %p102
    %p104 = scmp.ne.s32.totalorder %s93, %s96
    %p105 = scmp.eq.s32.totalorder %s18, 1
    %p106 = por %p104, %p105
    %p107 = scmp.ne.s32.totalorder %s96, %s97
    %p108 = scmp.eq.s32.totalorder %s18, 0
    %p109 = por %p107, %p108
    %p110 = scmp.ne.s32.totalorder %s96, %s97
    %p111 = scmp.eq.s32.totalorder %s19, 1
    %p112 = por %p110, %p111
    %p114 = scmp.ne.s32.totalorder %s97, %s113
    %p115 = scmp.eq.s32.totalorder %s19, 0
    %p116 = por %p114, %p115
    %s117 = ssub.s32 %s20, %s32
    %s118 = ssub.s32 %s21, %s28
    %s119 = sor.u32 %s117, %s118
    %p120 = scmp.eq.s32.totalorder %s119, 0
    %s122 = sadd.s32 %s121, 1
    %s123 = scalar_select %p120, %s121, %s122
    %p126 = pneg %p120
    %p127 = scmp.eq.s32.totalorder %s13, 1
    %p128 = por %p126, %p127
    %p129 = scmp.ne.s32.totalorder %s121, %s124
    %p130 = scmp.eq.s32.totalorder %s13, 0
    %p131 = por %p129, %p130
    %p132 = scmp.ne.s32.totalorder %s121, %s124
    %p133 = scmp.eq.s32.totalorder %s18, 1
    %p134 = por %p132, %p133
    %p135 = scmp.ne.s32.totalorder %s124, %s125
    %p136 = scmp.eq.s32.totalorder %s18, 0
    %p137 = por %p135, %p136
    %p138 = scmp.ne.s32.totalorder %s124, %s125
    %p139 = scmp.eq.s32.totalorder %s19, 1
    %p140 = por %p138, %p139
    %p142 = scmp.ne.s32.totalorder %s125, %s141
    %p143 = scmp.eq.s32.totalorder %s19, 0
    %p144 = por %p142, %p143
    %s146 = sadd.s32 %s145, 1
    %p149 = scmp.eq.s32.totalorder %s13, 1
    %p150 = scmp.ne.s32.totalorder %s145, %s147
    %p151 = scmp.eq.s32.totalorder %s13, 0
    %p152 = por %p150, %p151
    %p153 = scmp.ne.s32.totalorder %s145, %s147
    %p154 = scmp.eq.s32.totalorder %s18, 1
    %p155 = por %p153, %p154
    %p156 = scmp.ne.s32.totalorder %s147, %s148
    %p157 = scmp.eq.s32.totalorder %s18, 0
    %p158 = por %p156, %p157
    %p159 = scmp.ne.s32.totalorder %s147, %s148
    %p160 = scmp.eq.s32.totalorder %s19, 1
    %p161 = por %p159, %p160
    %p163 = scmp.ne.s32.totalorder %s148, %s162
    %p164 = scmp.eq.s32.totalorder %s19, 0
    %p165 = por %p163, %p164
    %s167 = sadd.s32 %s166, 1
    %p170 = scmp.eq.s32.totalorder %s13, 1
    %p171 = scmp.ne.s32.totalorder %s166, %s168
    %p172 = scmp.eq.s32.totalorder %s13, 0
    %p173 = por %p171, %p172
    %p174 = scmp.ne.s32.totalorder %s166, %s168
    %p175 = scmp.eq.s32.totalorder %s18, 1
    %p176 = por %p174, %p175
    %p177 = scmp.ne.s32.totalorder %s168, %s169
    %p178 = scmp.eq.s32.totalorder %s18, 0
    %p179 = por %p177, %p178
    %p180 = scmp.ne.s32.totalorder %s168, %s169
    %p181 = scmp.eq.s32.totalorder %s19, 1
    %p182 = por %p180, %p181
    %p184 = scmp.ne.s32.totalorder %s169, %s183
    %p185 = scmp.eq.s32.totalorder %s19, 0
    %p186 = por %p184, %p185
    %s188 = sadd.s32 %s187, 1
    %p191 = scmp.eq.s32.totalorder %s13, 1
    %p192 = scmp.ne.s32.totalorder %s187, %s189
    %p193 = scmp.eq.s32.totalorder %s13, 0
    %p194 = por %p192, %p193
    %p195 = scmp.ne.s32.totalorder %s187, %s189
    %p196 = scmp.eq.s32.totalorder %s18, 1
    %p197 = por %p195, %p196
    %p198 = scmp.ne.s32.totalorder %s189, %s190
    %p199 = scmp.eq.s32.totalorder %s18, 0
    %p200 = por %p198, %p199
    %p201 = scmp.ne.s32.totalorder %s189, %s190
    %p202 = scmp.eq.s32.totalorder %s19, 1
    %p203 = por %p201, %p202
    %p205 = scmp.ne.s32.totalorder %s190, %s204
    %p206 = scmp.eq.s32.totalorder %s19, 0
    %p207 = por %p205, %p206
    %s208 = ssub.s32 %s20, %s32
    %s209 = ssub.s32 %s21, %s28
    %s210 = sor.u32 %s208, %s209
    %p211 = scmp.eq.s32.totalorder %s210, 0
    %s213 = sadd.s32 %s212, 1
    %s214 = scalar_select %p211, %s212, %s213
    %p217 = pneg %p211
    %p218 = scmp.eq.s32.totalorder %s13, 1
    %p219 = por %p217, %p218
    %p220 = scmp.ne.s32.totalorder %s212, %s215
    %p221 = scmp.eq.s32.totalorder %s13, 0
    %p222 = por %p220, %p221
    %p223 = scmp.ne.s32.totalorder %s212, %s215
    %p224 = scmp.eq.s32.totalorder %s18, 1
    %p225 = por %p223, %p224
    %p226 = scmp.ne.s32.totalorder %s215, %s216
    %p227 = scmp.eq.s32.totalorder %s18, 0
    %p228 = por %p226, %p227
    %p229 = scmp.ne.s32.totalorder %s215, %s216
    %p230 = scmp.eq.s32.totalorder %s19, 1
    %p231 = por %p229, %p230
    %p233 = scmp.ne.s32.totalorder %s216, %s232
    %p234 = scmp.eq.s32.totalorder %s19, 0
    %p235 = por %p233, %p234
    %p236 = scmp.le.s32.totalorder 1, %s13
    %p237 = scmp.lt.s32.totalorder %s13, 3
    %p238 = pnand %p236, %p237
    %p239 = pneg %p238
    // Predicated region
    $region9: #{conv_downsampler.1} parent=5 // pred_check
      _
    $region10: #{conv_downsampler.1} parent=5 // pred_check_branch
      %241 = sbr.rel (%p238) target = $region12
    $region11: #{conv_downsampler.1} parent=5 // pred_region
      %s242 = ssub.s32 %s13, 1
      // Predicated region
      $region13: #{conv_downsampler.1} parent=11 // pred_check
        %p243 = pneg %p158
      $region14: #{conv_downsampler.1} parent=11 // pred_check_branch
        %245 = sbr.rel (%p243) target = $region16
      $region15: #{conv_downsampler.1} parent=11 // pred_region
        _
      $region16: #{conv_downsampler.1} parent=11 // pred_fallthru
        _
      // Predicated region
      $region17: #{conv_downsampler.1} parent=11 // pred_check
        %p246 = pneg %p179
      $region18: #{conv_downsampler.1} parent=11 // pred_check_branch
        %248 = sbr.rel (%p246) target = $region20
      $region19: #{conv_downsampler.1} parent=11 // pred_region
        _
      $region20: #{conv_downsampler.1} parent=11 // pred_fallthru
        _
      // Predicated region
      $region21: #{conv_downsampler.1} parent=11 // pred_check
        %p249 = pneg %p200
      $region22: #{conv_downsampler.1} parent=11 // pred_check_branch
        %251 = sbr.rel (%p249) target = $region24
      $region23: #{conv_downsampler.1} parent=11 // pred_region
        _
      $region24: #{conv_downsampler.1} parent=11 // pred_fallthru
        _
    $region12: #{conv_downsampler.1} parent=5 // pred_fallthru
      _
    %p252 = scmp.lt.s32.totalorder %s13, 2
    // Predicated region
    $region25: #{conv_downsampler.1} parent=5 // pred_check
      %p253 = pneg %p252
    $region26: #{conv_downsampler.1} parent=5 // pred_check_branch
      %255 = sbr.rel (%p253) target = $region28
    $region27: #{conv_downsampler.1} parent=5 // pred_region
      // Predicated region
      $region29: #{conv_downsampler.1} parent=27 // pred_check
        %p256 = pneg %p47
      $region30: #{conv_downsampler.1} parent=27 // pred_check_branch
        %258 = sbr.rel (%p256) target = $region32
      $region31: #{conv_downsampler.1} parent=27 // pred_region
        %p259 = scmp.lt.s32.totalorder %s20, 1
        %s260 = scalar_select %p259, %s20, 1
        %p261 = scmp.lt.s32.totalorder %s21, 0
        %s262 = scalar_select %p261, %s21, 0
        %s263 = smul.addr %s262, 12
        %s264 = smul.addr %s260, 12
        %s265 = sadd.s32 %s263, %s264
        %s266 = smul.addr %s265, 4
        %s267 = scalar_lea.vmem %s0, %s266
      $region32: #{conv_downsampler.1} parent=27 // pred_fallthru
        _
      // Predicated region
      $region33: #{conv_downsampler.1} parent=27 // pred_check
        %p268 = pneg %p75
      $region34: #{conv_downsampler.1} parent=27 // pred_check_branch
        %270 = sbr.rel (%p268) target = $region36
      $region35: #{conv_downsampler.1} parent=27 // pred_region
        %p271 = scmp.lt.s32.totalorder %s20, 1
        %s272 = scalar_select %p271, %s20, 1
        %p273 = scmp.lt.s32.totalorder %s21, 0
        %s274 = scalar_select %p273, %s21, 0
        %s275 = smul.addr %s274, 12
        %s276 = smul.addr %s272, 12
        %s277 = sadd.s32 %s275, %s276
        %s278 = smul.addr %s277, 4
        %s279 = scalar_lea.vmem %s1, %s278
      $region36: #{conv_downsampler.1} parent=27 // pred_fallthru
        _
      // Predicated region
      $region37: #{conv_downsampler.1} parent=27 // pred_check
        %p280 = pneg %p103
      $region38: #{conv_downsampler.1} parent=27 // pred_check_branch
        %282 = sbr.rel (%p280) target = $region40
      $region39: #{conv_downsampler.1} parent=27 // pred_region
        %p283 = scmp.lt.s32.totalorder %s20, 1
        %s284 = scalar_select %p283, %s20, 1
        %p285 = scmp.lt.s32.totalorder %s21, 0
        %s286 = scalar_select %p285, %s21, 0
        %s287 = smul.addr %s286, 12
        %s288 = smul.addr %s284, 12
        %s289 = sadd.s32 %s287, %s288
        %s290 = smul.addr %s289, 4
        %s291 = scalar_lea.vmem %s2, %s290
      $region40: #{conv_downsampler.1} parent=27 // pred_fallthru
        _
      // Predicated region
      $region41: #{conv_downsampler.1} parent=27 // pred_check
        %p292 = pneg %p131
      $region42: #{conv_downsampler.1} parent=27 // pred_check_branch
        %294 = sbr.rel (%p292) target = $region44
      $region43: #{conv_downsampler.1} parent=27 // pred_region
        %p295 = scmp.lt.s32.totalorder %s20, 1
        %s296 = scalar_select %p295, %s20, 1
        %p297 = scmp.lt.s32.totalorder %s21, 0
        %s298 = scalar_select %p297, %s21, 0
        %s299 = smul.addr %s298, 12
        %s300 = smul.addr %s296, 12
        %s301 = sadd.s32 %s299, %s300
        %s302 = smul.addr %s301, 4
        %s303 = scalar_lea.vmem %s3, %s302
      $region44: #{conv_downsampler.1} parent=27 // pred_fallthru
        _
    $region28: #{conv_downsampler.1} parent=5 // pred_fallthru
      _
    %p304 = scmp.le.s32.totalorder 1, %s13
    %p305 = scmp.lt.s32.totalorder %s13, 3
    %p306 = pnand %p304, %p305
    %p307 = pneg %p306
    // Predicated region
    $region45: #{conv_downsampler.1} parent=5 // pred_check
      _
    $region46: #{conv_downsampler.1} parent=5 // pred_check_branch
      %309 = sbr.rel (%p306) target = $region48
    $region47: #{conv_downsampler.1} parent=5 // pred_region
      %s310 = ssub.s32 %s13, 1
      %p311 = scmp.lt.s32.totalorder %s22, 1
      %s312 = scalar_select %p311, %s22, 1
      %p313 = scmp.lt.s32.totalorder %s23, 0
      %s314 = scalar_select %p313, %s23, 0
      %s315 = smul.addr %s314, 12
      %s316 = smul.addr %s312, 12
      %s317 = sadd.s32 %s315, %s316
      %s318 = smul.addr %s317, 4
      %s319 = scalar_lea.vmem %s0, %s318
      %p320 = pneg %p53
      %p321 = pneg %p50
      %p322 = scmp.lt.s32.totalorder %s22, 1
      %s323 = scalar_select %p322, %s22, 1
      %p324 = scmp.lt.s32.totalorder %s23, 0
      %s325 = scalar_select %p324, %s23, 0
      %s326 = smul.addr %s325, 12
      %s327 = smul.addr %s323, 12
      %s328 = sadd.s32 %s326, %s327
      %s329 = smul.addr %s328, 4
      %s330 = scalar_lea.vmem %s1, %s329
      %p331 = pneg %p81
      %p332 = pneg %p78
      %p333 = scmp.lt.s32.totalorder %s22, 1
      %s334 = scalar_select %p333, %s22, 1
      %p335 = scmp.lt.s32.totalorder %s23, 0
      %s336 = scalar_select %p335, %s23, 0
      %s337 = smul.addr %s336, 12
      %s338 = smul.addr %s334, 12
      %s339 = sadd.s32 %s337, %s338
      %s340 = smul.addr %s339, 4
      %s341 = scalar_lea.vmem %s2, %s340
      %p342 = pneg %p109
      %p343 = pneg %p106
      %p344 = scmp.lt.s32.totalorder %s22, 1
      %s345 = scalar_select %p344, %s22, 1
      %p346 = scmp.lt.s32.totalorder %s23, 0
      %s347 = scalar_select %p346, %s23, 0
      %s348 = smul.addr %s347, 12
      %s349 = smul.addr %s345, 12
      %s350 = sadd.s32 %s348, %s349
      %s351 = smul.addr %s350, 4
      %s352 = scalar_lea.vmem %s3, %s351
      %p353 = pneg %p137
      %p354 = pneg %p134
      %p355 = pneg %p158
      %p356 = pneg %p155
      %p357 = pneg %p179
      %p358 = pneg %p176
      %p359 = pneg %p200
      %p360 = pneg %p197
      %p361 = pneg %p228
      %p362 = pneg %p225
      %p363 = scmp.lt.s32.totalorder %s22, 1
      %s364 = scalar_select %p363, %s22, 1
      %p365 = scmp.lt.s32.totalorder %s23, 0
      %s366 = scalar_select %p365, %s23, 0
      %s367 = smul.addr %s366, 9
      %s368 = smul.addr %s364, 9
      %s369 = sadd.s32 %s367, %s368
      %s370 = smul.addr %s369, 8
      %s371 = scalar_lea.vmem %s7, %s370
      %p372 = scmp.lt.s32.totalorder %s22, 1
      %s373 = scalar_select %p372, %s22, 1
      %p374 = scmp.lt.s32.totalorder %s23, 0
      %s375 = scalar_select %p374, %s23, 0
      %s376 = smul.addr %s375, 12
      %s377 = smul.addr %s373, 12
      %s378 = sadd.s32 %s376, %s377
      %s379 = smul.addr %s378, 4
      %s380 = scalar_lea.vmem %s0, %s379
      %p381 = scmp.lt.s32.totalorder %s22, 1
      %s382 = scalar_select %p381, %s22, 1
      %p383 = scmp.lt.s32.totalorder %s23, 0
      %s384 = scalar_select %p383, %s23, 0
      %s385 = smul.addr %s384, 12
      %s386 = smul.addr %s382, 12
      %s387 = sadd.s32 %s385, %s386
      %s388 = smul.addr %s387, 4
      %s389 = scalar_lea.vmem %s1, %s388
      %p390 = scmp.lt.s32.totalorder %s22, 1
      %s391 = scalar_select %p390, %s22, 1
      %p392 = scmp.lt.s32.totalorder %s23, 0
      %s393 = scalar_select %p392, %s23, 0
      %s394 = smul.addr %s393, 12
      %s395 = smul.addr %s391, 12
      %s396 = sadd.s32 %s394, %s395
      %s397 = smul.addr %s396, 4
      %s398 = scalar_lea.vmem %s2, %s397
      %p399 = scmp.lt.s32.totalorder %s22, 1
      %s400 = scalar_select %p399, %s22, 1
      %p401 = scmp.lt.s32.totalorder %s23, 0
      %s402 = scalar_select %p401, %s23, 0
      %s403 = smul.addr %s402, 12
      %s404 = smul.addr %s400, 12
      %s405 = sadd.s32 %s403, %s404
      %s406 = smul.addr %s405, 4
      %s407 = scalar_lea.vmem %s3, %s406
      %p408 = scmp.lt.s32.totalorder %s22, 1
      %s409 = scalar_select %p408, %s22, 1
      %p410 = scmp.lt.s32.totalorder %s23, 0
      %s411 = scalar_select %p410, %s23, 0
      %s412 = smul.addr %s411, 9
      %s413 = smul.addr %s409, 9
      %s414 = sadd.s32 %s412, %s413
      %s415 = smul.addr %s414, 8
      %s416 = scalar_lea.vmem %s7, %s415
      %v418 = vld [vmem:[%s380] sm:$0xf]
      %v419 = vld [vmem:[%s380 + $0x4] sm:$0xf]
      %v420 = vld [vmem:[%s380 + $0x8] sm:$0xf]
      %v421 = vld [vmem:[%s380 + $0xc] sm:$0xf]
      %v422 = vld [vmem:[%s380 + $0x10] sm:$0xf]
      %v423 = vld [vmem:[%s380 + $0x14] sm:$0xf]
      %v424 = vld [vmem:[%s380 + $0x18] sm:$0xf]
      %v425 = vld [vmem:[%s380 + $0x1c] sm:$0xf]
      %v426 = vld [vmem:[%s380 + $0x20] sm:$0xf]
      %427 = vst [vmem:[#allocation2] sm:$0xf] %v418
      %428 = vst [vmem:[#allocation2 + $0x24] sm:$0xf] %v419
      %429 = vst [vmem:[#allocation2 + $0x48] sm:$0xf] %v420
      %430 = vst [vmem:[#allocation2 + $0x6c] sm:$0xf] %v421
      %431 = vst [vmem:[#allocation2 + $0x90] sm:$0xf] %v422
      %432 = vst [vmem:[#allocation2 + $0xb4] sm:$0xf] %v423
      %433 = vst [vmem:[#allocation2 + $0xd8] sm:$0xf] %v424
      %434 = vst [vmem:[#allocation2 + $0xfc] sm:$0xf] %v425
      %435 = vst [vmem:[#allocation2 + $0x120] sm:$0xf] %v426
      %v436 = vld [vmem:[%s389] sm:$0xf]
      %v437 = vld [vmem:[%s389 + $0x4] sm:$0xf]
      %v438 = vld [vmem:[%s389 + $0x8] sm:$0xf]
      %v439 = vld [vmem:[%s389 + $0xc] sm:$0xf]
      %v440 = vld [vmem:[%s389 + $0x10] sm:$0xf]
      %v441 = vld [vmem:[%s389 + $0x14] sm:$0xf]
      %v442 = vld [vmem:[%s389 + $0x18] sm:$0xf]
      %v443 = vld [vmem:[%s389 + $0x1c] sm:$0xf]
      %v444 = vld [vmem:[%s389 + $0x20] sm:$0xf]
      %445 = vst [vmem:[#allocation2 + $0x4] sm:$0xf] %v436
      %446 = vst [vmem:[#allocation2 + $0x28] sm:$0xf] %v437
      %447 = vst [vmem:[#allocation2 + $0x4c] sm:$0xf] %v438
      %448 = vst [vmem:[#allocation2 + $0x70] sm:$0xf] %v439
      %449 = vst [vmem:[#allocation2 + $0x94] sm:$0xf] %v440
      %450 = vst [vmem:[#allocation2 + $0xb8] sm:$0xf] %v441
      %451 = vst [vmem:[#allocation2 + $0xdc] sm:$0xf] %v442
      %452 = vst [vmem:[#allocation2 + $0x100] sm:$0xf] %v443
      %453 = vst [vmem:[#allocation2 + $0x124] sm:$0xf] %v444
      %v454 = vld [vmem:[%s380] sm:$0xf]
      %v455 = vld [vmem:[%s380 + $0x4] sm:$0xf]
      %v456 = vld [vmem:[%s380 + $0x8] sm:$0xf]
      %v457 = vld [vmem:[%s380 + $0xc] sm:$0xf]
      %v458 = vld [vmem:[%s380 + $0x10] sm:$0xf]
      %v459 = vld [vmem:[%s380 + $0x14] sm:$0xf]
      %v460 = vld [vmem:[%s380 + $0x18] sm:$0xf]
      %v461 = vld [vmem:[%s380 + $0x1c] sm:$0xf]
      %v462 = vld [vmem:[%s380 + $0x20] sm:$0xf]
      %v463 = vld [vmem:[%s380 + $0x24] sm:$0x1]
      %vm464 = vsmask.f32 3328
      %vm465 = vsmask.f32 7440
      %vm466 = vmor %vm464, %vm465
      %v468 = vshrl.u32 %v454, 16
      %v470 = vrot.slane %v468, 4
      %v471 = vshll.u32 %v454, 16
      %v473 = vrot.slane %v471, 5
      %v474 = vor.u32 %v470, %v473
      %v475 = vrot.slane %v474, 4
      %v477 = vshll.u32 %v455, 16
      %v479 = vrot.slane %v477, 5
      %v480 = vsel %vm466, %v475, %v479
      %v481 = vshrl.u32 %v455, 16
      %v483 = vrot.slane %v481, 4
      %v484 = vor.u32 %v483, %v479
      %v485 = vrot.slane %v484, 4
      %v487 = vshll.u32 %v456, 16
      %v489 = vrot.slane %v487, 5
      %v490 = vsel %vm466, %v485, %v489
      %v491 = vshrl.u32 %v456, 16
      %v493 = vrot.slane %v491, 4
      %v494 = vor.u32 %v493, %v489
      %v495 = vrot.slane %v494, 4
      %v497 = vshll.u32 %v457, 16
      %v499 = vrot.slane %v497, 5
      %v500 = vsel %vm466, %v495, %v499
      %v501 = vshrl.u32 %v457, 16
      %v503 = vrot.slane %v501, 4
      %v504 = vor.u32 %v503, %v499
      %v505 = vrot.slane %v504, 4
      %v507 = vshll.u32 %v458, 16
      %v509 = vrot.slane %v507, 5
      %v510 = vsel %vm466, %v505, %v509
      %v511 = vshrl.u32 %v458, 16
      %v513 = vrot.slane %v511, 4
      %v514 = vor.u32 %v513, %v509
      %v515 = vrot.slane %v514, 4
      %v517 = vshll.u32 %v459, 16
      %v519 = vrot.slane %v517, 5
      %v520 = vsel %vm466, %v515, %v519
      %v521 = vshrl.u32 %v459, 16
      %v523 = vrot.slane %v521, 4
      %v524 = vor.u32 %v523, %v519
      %v525 = vrot.slane %v524, 4
      %v527 = vshll.u32 %v460, 16
      %v529 = vrot.slane %v527, 5
      %v530 = vsel %vm466, %v525, %v529
      %v531 = vshrl.u32 %v460, 16
      %v533 = vrot.slane %v531, 4
      %v534 = vor.u32 %v533, %v529
      %v535 = vrot.slane %v534, 4
      %v537 = vshll.u32 %v461, 16
      %v539 = vrot.slane %v537, 5
      %v540 = vsel %vm466, %v535, %v539
      %v541 = vshrl.u32 %v461, 16
      %v543 = vrot.slane %v541, 4
      %v544 = vor.u32 %v543, %v539
      %v545 = vrot.slane %v544, 4
      %v547 = vshll.u32 %v462, 16
      %v549 = vrot.slane %v547, 5
      %v550 = vsel %vm466, %v545, %v549
      %v551 = vshrl.u32 %v462, 16
      %v553 = vrot.slane %v551, 4
      %v554 = vor.u32 %v553, %v549
      %v555 = vrot.slane %v554, 4
      %v557 = vshll.u32 %v463, 16
      %v559 = vrot.slane %v557, 5
      %v560 = vsel %vm466, %v555, %v559
      %570 = vst [vmem:[#allocation2 + $0x8] sm:$0xf] %v480
      %571 = vst [vmem:[#allocation2 + $0x2c] sm:$0xf] %v490
      %572 = vst [vmem:[#allocation2 + $0x50] sm:$0xf] %v500
      %573 = vst [vmem:[#allocation2 + $0x74] sm:$0xf] %v510
      %574 = vst [vmem:[#allocation2 + $0x98] sm:$0xf] %v520
      %575 = vst [vmem:[#allocation2 + $0xbc] sm:$0xf] %v530
      %576 = vst [vmem:[#allocation2 + $0xe0] sm:$0xf] %v540
      %577 = vst [vmem:[#allocation2 + $0x104] sm:$0xf] %v550
      %578 = vst [vmem:[#allocation2 + $0x128] sm:$0xf] %v560
      %v579 = vld [vmem:[%s398] sm:$0xf]
      %v580 = vld [vmem:[%s398 + $0x4] sm:$0xf]
      %v581 = vld [vmem:[%s398 + $0x8] sm:$0xf]
      %v582 = vld [vmem:[%s398 + $0xc] sm:$0xf]
      %v583 = vld [vmem:[%s398 + $0x10] sm:$0xf]
      %v584 = vld [vmem:[%s398 + $0x14] sm:$0xf]
      %v585 = vld [vmem:[%s398 + $0x18] sm:$0xf]
      %v586 = vld [vmem:[%s398 + $0x1c] sm:$0xf]
      %v587 = vld [vmem:[%s398 + $0x20] sm:$0xf]
      %588 = vst [vmem:[#allocation2 + $0xc] sm:$0xf] %v579
      %589 = vst [vmem:[#allocation2 + $0x30] sm:$0xf] %v580
      %590 = vst [vmem:[#allocation2 + $0x54] sm:$0xf] %v581
      %591 = vst [vmem:[#allocation2 + $0x78] sm:$0xf] %v582
      %592 = vst [vmem:[#allocation2 + $0x9c] sm:$0xf] %v583
      %593 = vst [vmem:[#allocation2 + $0xc0] sm:$0xf] %v584
      %594 = vst [vmem:[#allocation2 + $0xe4] sm:$0xf] %v585
      %595 = vst [vmem:[#allocation2 + $0x108] sm:$0xf] %v586
      %596 = vst [vmem:[#allocation2 + $0x12c] sm:$0xf] %v587
      %v597 = vld [vmem:[%s407] sm:$0xf]
      %v598 = vld [vmem:[%s407 + $0x4] sm:$0xf]
      %v599 = vld [vmem:[%s407 + $0x8] sm:$0xf]
      %v600 = vld [vmem:[%s407 + $0xc] sm:$0xf]
      %v601 = vld [vmem:[%s407 + $0x10] sm:$0xf]
      %v602 = vld [vmem:[%s407 + $0x14] sm:$0xf]
      %v603 = vld [vmem:[%s407 + $0x18] sm:$0xf]
      %v604 = vld [vmem:[%s407 + $0x1c] sm:$0xf]
      %v605 = vld [vmem:[%s407 + $0x20] sm:$0xf]
      %606 = vst [vmem:[#allocation2 + $0x10] sm:$0xf] %v597
      %607 = vst [vmem:[#allocation2 + $0x34] sm:$0xf] %v598
      %608 = vst [vmem:[#allocation2 + $0x58] sm:$0xf] %v599
      %609 = vst [vmem:[#allocation2 + $0x7c] sm:$0xf] %v600
      %610 = vst [vmem:[#allocation2 + $0xa0] sm:$0xf] %v601
      %611 = vst [vmem:[#allocation2 + $0xc4] sm:$0xf] %v602
      %612 = vst [vmem:[#allocation2 + $0xe8] sm:$0xf] %v603
      %613 = vst [vmem:[#allocation2 + $0x10c] sm:$0xf] %v604
      %614 = vst [vmem:[#allocation2 + $0x130] sm:$0xf] %v605
      %v615 = vld [vmem:[%s398] sm:$0xf]
      %v616 = vld [vmem:[%s398 + $0x4] sm:$0xf]
      %v617 = vld [vmem:[%s398 + $0x8] sm:$0xf]
      %v618 = vld [vmem:[%s398 + $0xc] sm:$0xf]
      %v619 = vld [vmem:[%s398 + $0x10] sm:$0xf]
      %v620 = vld [vmem:[%s398 + $0x14] sm:$0xf]
      %v621 = vld [vmem:[%s398 + $0x18] sm:$0xf]
      %v622 = vld [vmem:[%s398 + $0x1c] sm:$0xf]
      %v623 = vld [vmem:[%s398 + $0x20] sm:$0xf]
      %v624 = vld [vmem:[%s398 + $0x24] sm:$0x1]
      %v626 = vshrl.u32 %v615, 16
      %v628 = vrot.slane %v626, 4
      %v629 = vshll.u32 %v615, 16
      %v631 = vrot.slane %v629, 5
      %v632 = vor.u32 %v628, %v631
      %v633 = vrot.slane %v632, 4
      %v635 = vshll.u32 %v616, 16
      %v637 = vrot.slane %v635, 5
      %v638 = vsel %vm466, %v633, %v637
      %v639 = vshrl.u32 %v616, 16
      %v641 = vrot.slane %v639, 4
      %v642 = vor.u32 %v641, %v637
      %v643 = vrot.slane %v642, 4
      %v645 = vshll.u32 %v617, 16
      %v647 = vrot.slane %v645, 5
      %v648 = vsel %vm466, %v643, %v647
      %v649 = vshrl.u32 %v617, 16
      %v651 = vrot.slane %v649, 4
      %v652 = vor.u32 %v651, %v647
      %v653 = vrot.slane %v652, 4
      %v655 = vshll.u32 %v618, 16
      %v657 = vrot.slane %v655, 5
      %v658 = vsel %vm466, %v653, %v657
      %v659 = vshrl.u32 %v618, 16
      %v661 = vrot.slane %v659, 4
      %v662 = vor.u32 %v661, %v657
      %v663 = vrot.slane %v662, 4
      %v665 = vshll.u32 %v619, 16
      %v667 = vrot.slane %v665, 5
      %v668 = vsel %vm466, %v663, %v667
      %v669 = vshrl.u32 %v619, 16
      %v671 = vrot.slane %v669, 4
      %v672 = vor.u32 %v671, %v667
      %v673 = vrot.slane %v672, 4
      %v675 = vshll.u32 %v620, 16
      %v677 = vrot.slane %v675, 5
      %v678 = vsel %vm466, %v673, %v677
      %v679 = vshrl.u32 %v620, 16
      %v681 = vrot.slane %v679, 4
      %v682 = vor.u32 %v681, %v677
      %v683 = vrot.slane %v682, 4
      %v685 = vshll.u32 %v621, 16
      %v687 = vrot.slane %v685, 5
      %v688 = vsel %vm466, %v683, %v687
      %v689 = vshrl.u32 %v621, 16
      %v691 = vrot.slane %v689, 4
      %v692 = vor.u32 %v691, %v687
      %v693 = vrot.slane %v692, 4
      %v695 = vshll.u32 %v622, 16
      %v697 = vrot.slane %v695, 5
      %v698 = vsel %vm466, %v693, %v697
      %v699 = vshrl.u32 %v622, 16
      %v701 = vrot.slane %v699, 4
      %v702 = vor.u32 %v701, %v697
      %v703 = vrot.slane %v702, 4
      %v705 = vshll.u32 %v623, 16
      %v707 = vrot.slane %v705, 5
      %v708 = vsel %vm466, %v703, %v707
      %v709 = vshrl.u32 %v623, 16
      %v711 = vrot.slane %v709, 4
      %v712 = vor.u32 %v711, %v707
      %v713 = vrot.slane %v712, 4
      %v715 = vshll.u32 %v624, 16
      %v717 = vrot.slane %v715, 5
      %v718 = vsel %vm466, %v713, %v717
      %728 = vst [vmem:[#allocation2 + $0x14] sm:$0xf] %v638
      %729 = vst [vmem:[#allocation2 + $0x38] sm:$0xf] %v648
      %730 = vst [vmem:[#allocation2 + $0x5c] sm:$0xf] %v658
      %731 = vst [vmem:[#allocation2 + $0x80] sm:$0xf] %v668
      %732 = vst [vmem:[#allocation2 + $0xa4] sm:$0xf] %v678
      %733 = vst [vmem:[#allocation2 + $0xc8] sm:$0xf] %v688
      %734 = vst [vmem:[#allocation2 + $0xec] sm:$0xf] %v698
      %735 = vst [vmem:[#allocation2 + $0x110] sm:$0xf] %v708
      %736 = vst [vmem:[#allocation2 + $0x134] sm:$0xf] %v718
      %v737 = vld [vmem:[%s380 + $0x4] sm:$0xf]
      %v738 = vld [vmem:[%s380 + $0x8] sm:$0xf]
      %v739 = vld [vmem:[%s380 + $0xc] sm:$0xf]
      %v740 = vld [vmem:[%s380 + $0x10] sm:$0xf]
      %v741 = vld [vmem:[%s380 + $0x14] sm:$0xf]
      %v742 = vld [vmem:[%s380 + $0x18] sm:$0xf]
      %v743 = vld [vmem:[%s380 + $0x1c] sm:$0xf]
      %v744 = vld [vmem:[%s380 + $0x20] sm:$0xf]
      %v745 = vld [vmem:[%s380 + $0x24] sm:$0xf]
      %v746 = vld [vmem:[%s380 + $0x28] sm:$0x1]
      %v748 = vshrl.u32 %v737, 16
      %v750 = vrot.slane %v748, 4
      %v751 = vshll.u32 %v737, 16
      %v753 = vrot.slane %v751, 5
      %v754 = vor.u32 %v750, %v753
      %v755 = vrot.slane %v754, 4
      %v757 = vshll.u32 %v738, 16
      %v759 = vrot.slane %v757, 5
      %v760 = vsel %vm466, %v755, %v759
      %v761 = vshrl.u32 %v738, 16
      %v763 = vrot.slane %v761, 4
      %v764 = vor.u32 %v763, %v759
      %v765 = vrot.slane %v764, 4
      %v767 = vshll.u32 %v739, 16
      %v769 = vrot.slane %v767, 5
      %v770 = vsel %vm466, %v765, %v769
      %v771 = vshrl.u32 %v739, 16
      %v773 = vrot.slane %v771, 4
      %v774 = vor.u32 %v773, %v769
      %v775 = vrot.slane %v774, 4
      %v777 = vshll.u32 %v740, 16
      %v779 = vrot.slane %v777, 5
      %v780 = vsel %vm466, %v775, %v779
      %v781 = vshrl.u32 %v740, 16
      %v783 = vrot.slane %v781, 4
      %v784 = vor.u32 %v783, %v779
      %v785 = vrot.slane %v784, 4
      %v787 = vshll.u32 %v741, 16
      %v789 = vrot.slane %v787, 5
      %v790 = vsel %vm466, %v785, %v789
      %v791 = vshrl.u32 %v741, 16
      %v793 = vrot.slane %v791, 4
      %v794 = vor.u32 %v793, %v789
      %v795 = vrot.slane %v794, 4
      %v797 = vshll.u32 %v742, 16
      %v799 = vrot.slane %v797, 5
      %v800 = vsel %vm466, %v795, %v799
      %v801 = vshrl.u32 %v742, 16
      %v803 = vrot.slane %v801, 4
      %v804 = vor.u32 %v803, %v799
      %v805 = vrot.slane %v804, 4
      %v807 = vshll.u32 %v743, 16
      %v809 = vrot.slane %v807, 5
      %v810 = vsel %vm466, %v805, %v809
      %v811 = vshrl.u32 %v743, 16
      %v813 = vrot.slane %v811, 4
      %v814 = vor.u32 %v813, %v809
      %v815 = vrot.slane %v814, 4
      %v817 = vshll.u32 %v744, 16
      %v819 = vrot.slane %v817, 5
      %v820 = vsel %vm466, %v815, %v819
      %v821 = vshrl.u32 %v744, 16
      %v823 = vrot.slane %v821, 4
      %v824 = vor.u32 %v823, %v819
      %v825 = vrot.slane %v824, 4
      %v827 = vshll.u32 %v745, 16
      %v829 = vrot.slane %v827, 5
      %v830 = vsel %vm466, %v825, %v829
      %v831 = vshrl.u32 %v745, 16
      %v833 = vrot.slane %v831, 4
      %v834 = vor.u32 %v833, %v829
      %v835 = vrot.slane %v834, 4
      %v837 = vshll.u32 %v746, 16
      %v839 = vrot.slane %v837, 5
      %v840 = vsel %vm466, %v835, %v839
      %850 = vst [vmem:[#allocation2 + $0x18] sm:$0xf] %v760
      %851 = vst [vmem:[#allocation2 + $0x3c] sm:$0xf] %v770
      %852 = vst [vmem:[#allocation2 + $0x60] sm:$0xf] %v780
      %853 = vst [vmem:[#allocation2 + $0x84] sm:$0xf] %v790
      %854 = vst [vmem:[#allocation2 + $0xa8] sm:$0xf] %v800
      %855 = vst [vmem:[#allocation2 + $0xcc] sm:$0xf] %v810
      %856 = vst [vmem:[#allocation2 + $0xf0] sm:$0xf] %v820
      %857 = vst [vmem:[#allocation2 + $0x114] sm:$0xf] %v830
      %858 = vst [vmem:[#allocation2 + $0x138] sm:$0xf] %v840
      %v859 = vld [vmem:[%s389 + $0x4] sm:$0xf]
      %v860 = vld [vmem:[%s389 + $0x8] sm:$0xf]
      %v861 = vld [vmem:[%s389 + $0xc] sm:$0xf]
      %v862 = vld [vmem:[%s389 + $0x10] sm:$0xf]
      %v863 = vld [vmem:[%s389 + $0x14] sm:$0xf]
      %v864 = vld [vmem:[%s389 + $0x18] sm:$0xf]
      %v865 = vld [vmem:[%s389 + $0x1c] sm:$0xf]
      %v866 = vld [vmem:[%s389 + $0x20] sm:$0xf]
      %v867 = vld [vmem:[%s389 + $0x24] sm:$0xf]
      %v868 = vld [vmem:[%s389 + $0x28] sm:$0x1]
      %v870 = vshrl.u32 %v859, 16
      %v872 = vrot.slane %v870, 4
      %v873 = vshll.u32 %v859, 16
      %v875 = vrot.slane %v873, 5
      %v876 = vor.u32 %v872, %v875
      %v877 = vrot.slane %v876, 4
      %v879 = vshll.u32 %v860, 16
      %v881 = vrot.slane %v879, 5
      %v882 = vsel %vm466, %v877, %v881
      %v883 = vshrl.u32 %v860, 16
      %v885 = vrot.slane %v883, 4
      %v886 = vor.u32 %v885, %v881
      %v887 = vrot.slane %v886, 4
      %v889 = vshll.u32 %v861, 16
      %v891 = vrot.slane %v889, 5
      %v892 = vsel %vm466, %v887, %v891
      %v893 = vshrl.u32 %v861, 16
      %v895 = vrot.slane %v893, 4
      %v896 = vor.u32 %v895, %v891
      %v897 = vrot.slane %v896, 4
      %v899 = vshll.u32 %v862, 16
      %v901 = vrot.slane %v899, 5
      %v902 = vsel %vm466, %v897, %v901
      %v903 = vshrl.u32 %v862, 16
      %v905 = vrot.slane %v903, 4
      %v906 = vor.u32 %v905, %v901
      %v907 = vrot.slane %v906, 4
      %v909 = vshll.u32 %v863, 16
      %v911 = vrot.slane %v909, 5
      %v912 = vsel %vm466, %v907, %v911
      %v913 = vshrl.u32 %v863, 16
      %v915 = vrot.slane %v913, 4
      %v916 = vor.u32 %v915, %v911
      %v917 = vrot.slane %v916, 4
      %v919 = vshll.u32 %v864, 16
      %v921 = vrot.slane %v919, 5
      %v922 = vsel %vm466, %v917, %v921
      %v923 = vshrl.u32 %v864, 16
      %v925 = vrot.slane %v923, 4
      %v926 = vor.u32 %v925, %v921
      %v927 = vrot.slane %v926, 4
      %v929 = vshll.u32 %v865, 16
      %v931 = vrot.slane %v929, 5
      %v932 = vsel %vm466, %v927, %v931
      %v933 = vshrl.u32 %v865, 16
      %v935 = vrot.slane %v933, 4
      %v936 = vor.u32 %v935, %v931
      %v937 = vrot.slane %v936, 4
      %v939 = vshll.u32 %v866, 16
      %v941 = vrot.slane %v939, 5
      %v942 = vsel %vm466, %v937, %v941
      %v943 = vshrl.u32 %v866, 16
      %v945 = vrot.slane %v943, 4
      %v946 = vor.u32 %v945, %v941
      %v947 = vrot.slane %v946, 4
      %v949 = vshll.u32 %v867, 16
      %v951 = vrot.slane %v949, 5
      %v952 = vsel %vm466, %v947, %v951
      %v953 = vshrl.u32 %v867, 16
      %v955 = vrot.slane %v953, 4
      %v956 = vor.u32 %v955, %v951
      %v957 = vrot.slane %v956, 4
      %v959 = vshll.u32 %v868, 16
      %v961 = vrot.slane %v959, 5
      %v962 = vsel %vm466, %v957, %v961
      %972 = vst [vmem:[#allocation2 + $0x1c] sm:$0xf] %v882
      %973 = vst [vmem:[#allocation2 + $0x40] sm:$0xf] %v892
      %974 = vst [vmem:[#allocation2 + $0x64] sm:$0xf] %v902
      %975 = vst [vmem:[#allocation2 + $0x88] sm:$0xf] %v912
      %976 = vst [vmem:[#allocation2 + $0xac] sm:$0xf] %v922
      %977 = vst [vmem:[#allocation2 + $0xd0] sm:$0xf] %v932
      %978 = vst [vmem:[#allocation2 + $0xf4] sm:$0xf] %v942
      %979 = vst [vmem:[#allocation2 + $0x118] sm:$0xf] %v952
      %980 = vst [vmem:[#allocation2 + $0x13c] sm:$0xf] %v962
      %v981 = vld [vmem:[%s380 + $0x4] sm:$0xe]
      %v982 = vld [vmem:[%s380 + $0x8] sm:$0xf]
      %v983 = vld [vmem:[%s380 + $0xc] sm:$0xf]
      %v984 = vld [vmem:[%s380 + $0x10] sm:$0xf]
      %v985 = vld [vmem:[%s380 + $0x14] sm:$0xf]
      %v986 = vld [vmem:[%s380 + $0x18] sm:$0xf]
      %v987 = vld [vmem:[%s380 + $0x1c] sm:$0xf]
      %v988 = vld [vmem:[%s380 + $0x20] sm:$0xf]
      %v989 = vld [vmem:[%s380 + $0x24] sm:$0xf]
      %v990 = vld [vmem:[%s380 + $0x28] sm:$0x1]
      %vm1001 = vcmask 1042432
      %vm1002 = vcmask 1046532
      %vm1003 = vmor %vm1001, %vm1002
      %v1004 = vrot.slane %v981, 5
      %v1005 = vrot.slane %v1004, 4
      %v1006 = vrot.slane %v982, 5
      %v1007 = vsel %vm1003, %v1005, %v1006
      %v1008 = vrot.slane %v1006, 4
      %v1009 = vrot.slane %v983, 5
      %v1010 = vsel %vm1003, %v1008, %v1009
      %v1011 = vrot.slane %v1009, 4
      %v1012 = vrot.slane %v984, 5
      %v1013 = vsel %vm1003, %v1011, %v1012
      %v1014 = vrot.slane %v1012, 4
      %v1015 = vrot.slane %v985, 5
      %v1016 = vsel %vm1003, %v1014, %v1015
      %v1017 = vrot.slane %v1015, 4
      %v1018 = vrot.slane %v986, 5
      %v1019 = vsel %vm1003, %v1017, %v1018
      %v1020 = vrot.slane %v1018, 4
      %v1021 = vrot.slane %v987, 5
      %v1022 = vsel %vm1003, %v1020, %v1021
      %v1023 = vrot.slane %v1021, 4
      %v1024 = vrot.slane %v988, 5
      %v1025 = vsel %vm1003, %v1023, %v1024
      %v1026 = vrot.slane %v1024, 4
      %v1027 = vrot.slane %v989, 5
      %v1028 = vsel %vm1003, %v1026, %v1027
      %v1029 = vrot.slane %v1027, 4
      %v1030 = vrot.slane %v990, 5
      %v1031 = vsel %vm1003, %v1029, %v1030
      %1041 = vst [vmem:[#allocation2 + $0x20] sm:$0xf] %v1007
      %1042 = vst [vmem:[#allocation2 + $0x44] sm:$0xf] %v1010
      %1043 = vst [vmem:[#allocation2 + $0x68] sm:$0xf] %v1013
      %1044 = vst [vmem:[#allocation2 + $0x8c] sm:$0xf] %v1016
      %1045 = vst [vmem:[#allocation2 + $0xb0] sm:$0xf] %v1019
      %1046 = vst [vmem:[#allocation2 + $0xd4] sm:$0xf] %v1022
      %1047 = vst [vmem:[#allocation2 + $0xf8] sm:$0xf] %v1025
      %1048 = vst [vmem:[#allocation2 + $0x11c] sm:$0xf] %v1028
      %1049 = vst [vmem:[#allocation2 + $0x140] sm:$0xf] %v1031
      %v1050 = vld [vmem:[#allocation2] sm:$0xff]
      %v1051 = vld [vmem:[#allocation2 + $0x8] sm:$0xff]
      %v1052 = vld [vmem:[#allocation2 + $0x10] sm:$0xff]
      %v1053 = vld [vmem:[#allocation2 + $0x18] sm:$0xff]
      %v1054 = vld [vmem:[#allocation2 + $0x20] sm:$0xf]
      %v1055 = vld [vmem:[#allocation2 + $0x24] sm:$0xff]
      %v1056 = vld [vmem:[#allocation2 + $0x2c] sm:$0xff]
      %v1057 = vld [vmem:[#allocation2 + $0x34] sm:$0xff]
      %v1058 = vld [vmem:[#allocation2 + $0x3c] sm:$0xff]
      %v1059 = vld [vmem:[#allocation2 + $0x44] sm:$0xf]
      %v1060 = vld [vmem:[#allocation2 + $0x48] sm:$0xff]
      %v1061 = vld [vmem:[#allocation2 + $0x50] sm:$0xff]
      %v1062 = vld [vmem:[#allocation2 + $0x58] sm:$0xff]
      %v1063 = vld [vmem:[#allocation2 + $0x60] sm:$0xff]
      %v1064 = vld [vmem:[#allocation2 + $0x68] sm:$0xf]
      %v1065 = vld [vmem:[#allocation2 + $0x6c] sm:$0xff]
      %v1066 = vld [vmem:[#allocation2 + $0x74] sm:$0xff]
      %v1067 = vld [vmem:[#allocation2 + $0x7c] sm:$0xff]
      %v1068 = vld [vmem:[#allocation2 + $0x84] sm:$0xff]
      %v1069 = vld [vmem:[#allocation2 + $0x8c] sm:$0xf]
      %v1070 = vld [vmem:[#allocation2 + $0x90] sm:$0xff]
      %v1071 = vld [vmem:[#allocation2 + $0x98] sm:$0xff]
      %v1072 = vld [vmem:[#allocation2 + $0xa0] sm:$0xff]
      %v1073 = vld [vmem:[#allocation2 + $0xa8] sm:$0xff]
      %v1074 = vld [vmem:[#allocation2 + $0xb0] sm:$0xf]
      %v1075 = vld [vmem:[#allocation2 + $0xb4] sm:$0xff]
      %v1076 = vld [vmem:[#allocation2 + $0xbc] sm:$0xff]
      %v1077 = vld [vmem:[#allocation2 + $0xc4] sm:$0xff]
      %v1078 = vld [vmem:[#allocation2 + $0xcc] sm:$0xff]
      %v1079 = vld [vmem:[#allocation2 + $0xd4] sm:$0xf]
      %v1080 = vld [vmem:[#allocation2 + $0xd8] sm:$0xff]
      %v1081 = vld [vmem:[#allocation2 + $0xe0] sm:$0xff]
      %v1082 = vld [vmem:[#allocation2 + $0xe8] sm:$0xff]
      %v1083 = vld [vmem:[#allocation2 + $0xf0] sm:$0xff]
      %v1084 = vld [vmem:[#allocation2 + $0xf8] sm:$0xf]
      %v1085 = vld [vmem:[#allocation2 + $0xfc] sm:$0xff]
      %v1086 = vld [vmem:[#allocation2 + $0x104] sm:$0xff]
      %v1087 = vld [vmem:[#allocation2 + $0x10c] sm:$0xff]
      %v1088 = vld [vmem:[#allocation2 + $0x114] sm:$0xff]
      %v1089 = vld [vmem:[#allocation2 + $0x11c] sm:$0xf]
      %v1090 = vld [vmem:[#allocation2 + $0x120] sm:$0xff]
      %v1091 = vld [vmem:[#allocation2 + $0x128] sm:$0xff]
      %v1092 = vld [vmem:[#allocation2 + $0x130] sm:$0xff]
      %v1093 = vld [vmem:[#allocation2 + $0x138] sm:$0xff]
      %v1094 = vld [vmem:[#allocation2 + $0x140] sm:$0xf]
      %v1095 = vld [vmem:[%s4] sm:$0xf]
      %v1096 = vld [vmem:[%s4 + $0x4] sm:$0xf]
      %v1097 = vld [vmem:[%s4 + $0x8] sm:$0xf]
      %v1098 = vld [vmem:[%s4 + $0xc] sm:$0xf]
      %v1099 = vld [vmem:[%s4 + $0x10] sm:$0xf]
      %v1100 = vld [vmem:[%s4 + $0x14] sm:$0xf]
      %v1101 = vld [vmem:[%s4 + $0x18] sm:$0xf]
      %v1102 = vld [vmem:[%s4 + $0x1c] sm:$0xf]
      %v1103 = vld [vmem:[%s4 + $0x20] sm:$0xf]
      %v1104 = vld [vmem:[%s4 + $0x24] sm:$0xf]
      %v1105 = vld [vmem:[%s4 + $0x28] sm:$0xf]
      %v1106 = vld [vmem:[%s4 + $0x2c] sm:$0xf]
      %v1107 = vld [vmem:[%s4 + $0x30] sm:$0xf]
      %v1108 = vld [vmem:[%s4 + $0x34] sm:$0xf]
      %v1109 = vld [vmem:[%s4 + $0x38] sm:$0xf]
      %v1110 = vld [vmem:[%s4 + $0x3c] sm:$0xf]
      %v1111 = vld [vmem:[%s4 + $0x40] sm:$0xf]
      %v1112 = vld [vmem:[%s4 + $0x44] sm:$0xf]
      %v1113 = vld [vmem:[%s4 + $0x48] sm:$0xf]
      %v1114 = vld [vmem:[%s4 + $0x4c] sm:$0xf]
      %v1115 = vld [vmem:[%s4 + $0x50] sm:$0xf]
      %v1116 = vld [vmem:[%s4 + $0x54] sm:$0xf]
      %v1117 = vld [vmem:[%s4 + $0x58] sm:$0xf]
      %v1118 = vld [vmem:[%s4 + $0x5c] sm:$0xf]
      %v1119 = vld [vmem:[%s4 + $0x60] sm:$0xf]
      %v1120 = vld [vmem:[%s4 + $0x64] sm:$0xf]
      %v1121 = vld [vmem:[%s4 + $0x68] sm:$0xf]
      %v1122 = vld [vmem:[%s4 + $0x6c] sm:$0xf]
      %v1123 = vld [vmem:[%s4 + $0x70] sm:$0xf]
      %v1124 = vld [vmem:[%s4 + $0x74] sm:$0xf]
      %v1125 = vld [vmem:[%s4 + $0x78] sm:$0xf]
      %v1126 = vld [vmem:[%s4 + $0x7c] sm:$0xf]
      %v1127 = vld [vmem:[%s4 + $0x80] sm:$0xf]
      %v1128 = vld [vmem:[%s4 + $0x84] sm:$0xf]
      %v1129 = vld [vmem:[%s4 + $0x88] sm:$0xf]
      %v1130 = vld [vmem:[%s4 + $0x8c] sm:$0xf]
      %v1131 = vld [vmem:[%s4 + $0x90] sm:$0xf]
      %v1132 = vld [vmem:[%s4 + $0x94] sm:$0xf]
      %v1133 = vld [vmem:[%s4 + $0x98] sm:$0xf]
      %v1134 = vld [vmem:[%s4 + $0x9c] sm:$0xf]
      %v1135 = vld [vmem:[%s4 + $0xa0] sm:$0xf]
      %v1136 = vld [vmem:[%s4 + $0xa4] sm:$0xf]
      %v1137 = vld [vmem:[%s4 + $0xa8] sm:$0xf]
      %v1138 = vld [vmem:[%s4 + $0xac] sm:$0xf]
      %v1139 = vld [vmem:[%s4 + $0xb0] sm:$0xf]
      %v1140 = vld [vmem:[%s4 + $0xb4] sm:$0xf]
      %v1141 = vld [vmem:[%s4 + $0xb8] sm:$0xf]
      %v1142 = vld [vmem:[%s4 + $0xbc] sm:$0xf]
      %v1143 = vld [vmem:[%s4 + $0xc0] sm:$0xf]
      %v1144 = vld [vmem:[%s4 + $0xc4] sm:$0xf]
      %v1145 = vld [vmem:[%s4 + $0xc8] sm:$0xf]
      %v1146 = vld [vmem:[%s4 + $0xcc] sm:$0xf]
      %v1147 = vld [vmem:[%s4 + $0xd0] sm:$0xf]
      %v1148 = vld [vmem:[%s4 + $0xd4] sm:$0xf]
      %v1149 = vld [vmem:[%s4 + $0xd8] sm:$0xf]
      %v1150 = vld [vmem:[%s4 + $0xdc] sm:$0xf]
      %v1151 = vld [vmem:[%s4 + $0xe0] sm:$0xf]
      %v1152 = vld [vmem:[%s4 + $0xe4] sm:$0xf]
      %v1153 = vld [vmem:[%s4 + $0xe8] sm:$0xf]
      %v1154 = vld [vmem:[%s4 + $0xec] sm:$0xf]
      %v1155 = vld [vmem:[%s4 + $0xf0] sm:$0xf]
      %v1156 = vld [vmem:[%s4 + $0xf4] sm:$0xf]
      %v1157 = vld [vmem:[%s4 + $0xf8] sm:$0xf]
      %v1158 = vld [vmem:[%s4 + $0xfc] sm:$0xf]
      %v1159 = vld [vmem:[%s4 + $0x100] sm:$0xf]
      %v1160 = vld [vmem:[%s4 + $0x104] sm:$0xf]
      %v1161 = vld [vmem:[%s4 + $0x108] sm:$0xf]
      %v1162 = vld [vmem:[%s4 + $0x10c] sm:$0xf]
      %v1163 = vld [vmem:[%s4 + $0x110] sm:$0xf]
      %v1164 = vld [vmem:[%s4 + $0x114] sm:$0xf]
      %v1165 = vld [vmem:[%s4 + $0x118] sm:$0xf]
      %v1166 = vld [vmem:[%s4 + $0x11c] sm:$0xf]
      %v1167 = vld [vmem:[%s4 + $0x120] sm:$0xf]
      %v1168 = vld [vmem:[%s4 + $0x124] sm:$0xf]
      %v1169 = vld [vmem:[%s4 + $0x128] sm:$0xf]
      %v1170 = vld [vmem:[%s4 + $0x12c] sm:$0xf]
      %v1171 = vld [vmem:[%s4 + $0x130] sm:$0xf]
      %v1172 = vld [vmem:[%s4 + $0x134] sm:$0xf]
      %v1173 = vld [vmem:[%s4 + $0x138] sm:$0xf]
      %v1174 = vld [vmem:[%s4 + $0x13c] sm:$0xf]
      %v1175 = vld [vmem:[%s4 + $0x140] sm:$0xf]
      %v1176 = vld [vmem:[%s4 + $0x144] sm:$0xf]
      %v1177 = vld [vmem:[%s4 + $0x148] sm:$0xf]
      %v1178 = vld [vmem:[%s4 + $0x14c] sm:$0xf]
      %v1179 = vld [vmem:[%s4 + $0x150] sm:$0xf]
      %v1180 = vld [vmem:[%s4 + $0x154] sm:$0xf]
      %v1181 = vld [vmem:[%s4 + $0x158] sm:$0xf]
      %v1182 = vld [vmem:[%s4 + $0x15c] sm:$0xf]
      %v1183 = vld [vmem:[%s4 + $0x160] sm:$0xf]
      %v1184 = vld [vmem:[%s4 + $0x164] sm:$0xf]
      %v1185 = vld [vmem:[%s4 + $0x168] sm:$0xf]
      %v1186 = vld [vmem:[%s4 + $0x16c] sm:$0xf]
      %v1187 = vld [vmem:[%s4 + $0x170] sm:$0xf]
      %v1188 = vld [vmem:[%s4 + $0x174] sm:$0xf]
      %v1189 = vld [vmem:[%s4 + $0x178] sm:$0xf]
      %v1190 = vld [vmem:[%s4 + $0x17c] sm:$0xf]
      %v1191 = vld [vmem:[%s4 + $0x180] sm:$0xf]
      %v1192 = vld [vmem:[%s4 + $0x184] sm:$0xf]
      %v1193 = vld [vmem:[%s4 + $0x188] sm:$0xf]
      %v1194 = vld [vmem:[%s4 + $0x18c] sm:$0xf]
      %v1195 = vld [vmem:[%s4 + $0x190] sm:$0xf]
      %v1196 = vld [vmem:[%s4 + $0x194] sm:$0xf]
      %v1197 = vld [vmem:[%s4 + $0x198] sm:$0xf]
      %v1198 = vld [vmem:[%s4 + $0x19c] sm:$0xf]
      %v1199 = vld [vmem:[%s4 + $0x1a0] sm:$0xf]
      %v1200 = vld [vmem:[%s4 + $0x1a4] sm:$0xf]
      %v1201 = vld [vmem:[%s4 + $0x1a8] sm:$0xf]
      %v1202 = vld [vmem:[%s4 + $0x1ac] sm:$0xf]
      %v1203 = vld [vmem:[%s4 + $0x1b0] sm:$0xf]
      %v1204 = vld [vmem:[%s4 + $0x1b4] sm:$0xf]
      %v1205 = vld [vmem:[%s4 + $0x1b8] sm:$0xf]
      %v1206 = vld [vmem:[%s4 + $0x1bc] sm:$0xf]
      %v1207 = vld [vmem:[%s4 + $0x1c0] sm:$0xf]
      %v1208 = vld [vmem:[%s4 + $0x1c4] sm:$0xf]
      %v1209 = vld [vmem:[%s4 + $0x1c8] sm:$0xf]
      %v1210 = vld [vmem:[%s4 + $0x1cc] sm:$0xf]
      %v1211 = vld [vmem:[%s4 + $0x1d0] sm:$0xf]
      %v1212 = vld [vmem:[%s4 + $0x1d4] sm:$0xf]
      %v1213 = vld [vmem:[%s4 + $0x1d8] sm:$0xf]
      %v1214 = vld [vmem:[%s4 + $0x1dc] sm:$0xf]
      %v1215 = vld [vmem:[%s4 + $0x1e0] sm:$0xf]
      %v1216 = vld [vmem:[%s4 + $0x1e4] sm:$0xf]
      %v1217 = vld [vmem:[%s4 + $0x1e8] sm:$0xf]
      %v1218 = vld [vmem:[%s4 + $0x1ec] sm:$0xf]
      %v1219 = vld [vmem:[%s4 + $0x1f0] sm:$0xf]
      %v1220 = vld [vmem:[%s4 + $0x1f4] sm:$0xf]
      %v1221 = vld [vmem:[%s4 + $0x1f8] sm:$0xf]
      %v1222 = vld [vmem:[%s4 + $0x1fc] sm:$0xf]
      %v1223 = vld [vmem:[%s4 + $0x200] sm:$0xf]
      %v1224 = vld [vmem:[%s4 + $0x204] sm:$0xf]
      %v1225 = vld [vmem:[%s4 + $0x208] sm:$0xf]
      %v1226 = vld [vmem:[%s4 + $0x20c] sm:$0xf]
      %v1227 = vld [vmem:[%s4 + $0x210] sm:$0xf]
      %v1228 = vld [vmem:[%s4 + $0x214] sm:$0xf]
      %v1229 = vld [vmem:[%s4 + $0x218] sm:$0xf]
      %v1230 = vld [vmem:[%s4 + $0x21c] sm:$0xf]
      %v1231 = vld [vmem:[%s4 + $0x220] sm:$0xf]
      %v1232 = vld [vmem:[%s4 + $0x224] sm:$0xf]
      %v1233 = vld [vmem:[%s4 + $0x228] sm:$0xf]
      %v1234 = vld [vmem:[%s4 + $0x22c] sm:$0xf]
      %v1235 = vld [vmem:[%s4 + $0x230] sm:$0xf]
      %v1236 = vld [vmem:[%s4 + $0x234] sm:$0xf]
      %v1237 = vld [vmem:[%s4 + $0x238] sm:$0xf]
      %v1238 = vld [vmem:[%s4 + $0x23c] sm:$0xf]
      %v1284 = vunpack.c.l.b16 %v1050
      %v1285 = vunpack.c.h.b16 %v1050
      %v1286 = vunpack.c.l.b16 %v1051
      %v1287 = vunpack.c.h.b16 %v1051
      %v1288 = vunpack.c.l.b16 %v1052
      %v1289 = vunpack.c.h.b16 %v1052
      %v1290 = vunpack.c.l.b16 %v1053
      %v1291 = vunpack.c.h.b16 %v1053
      %v1292 = vunpack.c.l.b16 %v1054
      %v1293 = vunpack.c.l.b16 %v1055
      %v1294 = vunpack.c.h.b16 %v1055
      %v1295 = vunpack.c.l.b16 %v1056
      %v1296 = vunpack.c.h.b16 %v1056
      %v1297 = vunpack.c.l.b16 %v1057
      %v1298 = vunpack.c.h.b16 %v1057
      %v1299 = vunpack.c.l.b16 %v1058
      %v1300 = vunpack.c.h.b16 %v1058
      %v1301 = vunpack.c.l.b16 %v1059
      %v1302 = vunpack.c.l.b16 %v1060
      %v1303 = vunpack.c.h.b16 %v1060
      %v1304 = vunpack.c.l.b16 %v1061
      %v1305 = vunpack.c.h.b16 %v1061
      %v1306 = vunpack.c.l.b16 %v1062
      %v1307 = vunpack.c.h.b16 %v1062
      %v1308 = vunpack.c.l.b16 %v1063
      %v1309 = vunpack.c.h.b16 %v1063
      %v1310 = vunpack.c.l.b16 %v1064
      %v1311 = vunpack.c.l.b16 %v1065
      %v1312 = vunpack.c.h.b16 %v1065
      %v1313 = vunpack.c.l.b16 %v1066
      %v1314 = vunpack.c.h.b16 %v1066
      %v1315 = vunpack.c.l.b16 %v1067
      %v1316 = vunpack.c.h.b16 %v1067
      %v1317 = vunpack.c.l.b16 %v1068
      %v1318 = vunpack.c.h.b16 %v1068
      %v1319 = vunpack.c.l.b16 %v1069
      %v1320 = vunpack.c.l.b16 %v1070
      %v1321 = vunpack.c.h.b16 %v1070
      %v1322 = vunpack.c.l.b16 %v1071
      %v1323 = vunpack.c.h.b16 %v1071
      %v1324 = vunpack.c.l.b16 %v1072
      %v1325 = vunpack.c.h.b16 %v1072
      %v1326 = vunpack.c.l.b16 %v1073
      %v1327 = vunpack.c.h.b16 %v1073
      %v1328 = vunpack.c.l.b16 %v1074
      %v1329 = vunpack.c.l.b16 %v1075
      %v1330 = vunpack.c.h.b16 %v1075
      %v1331 = vunpack.c.l.b16 %v1076
      %v1332 = vunpack.c.h.b16 %v1076
      %v1333 = vunpack.c.l.b16 %v1077
      %v1334 = vunpack.c.h.b16 %v1077
      %v1335 = vunpack.c.l.b16 %v1078
      %v1336 = vunpack.c.h.b16 %v1078
      %v1337 = vunpack.c.l.b16 %v1079
      %v1338 = vunpack.c.l.b16 %v1080
      %v1339 = vunpack.c.h.b16 %v1080
      %v1340 = vunpack.c.l.b16 %v1081
      %v1341 = vunpack.c.h.b16 %v1081
      %v1342 = vunpack.c.l.b16 %v1082
      %v1343 = vunpack.c.h.b16 %v1082
      %v1344 = vunpack.c.l.b16 %v1083
      %v1345 = vunpack.c.h.b16 %v1083
      %v1346 = vunpack.c.l.b16 %v1084
      %v1347 = vunpack.c.l.b16 %v1085
      %v1348 = vunpack.c.h.b16 %v1085
      %v1349 = vunpack.c.l.b16 %v1086
      %v1350 = vunpack.c.h.b16 %v1086
      %v1351 = vunpack.c.l.b16 %v1087
      %v1352 = vunpack.c.h.b16 %v1087
      %v1353 = vunpack.c.l.b16 %v1088
      %v1354 = vunpack.c.h.b16 %v1088
      %v1355 = vunpack.c.l.b16 %v1089
      %v1356 = vunpack.c.l.b16 %v1090
      %v1357 = vunpack.c.h.b16 %v1090
      %v1358 = vunpack.c.l.b16 %v1091
      %v1359 = vunpack.c.h.b16 %v1091
      %v1360 = vunpack.c.l.b16 %v1092
      %v1361 = vunpack.c.h.b16 %v1092
      %v1362 = vunpack.c.l.b16 %v1093
      %v1363 = vunpack.c.h.b16 %v1093
      %v1364 = vunpack.c.l.b16 %v1094
      %v1365 = vpack.c.b16 %v1293, %v1284
      %v1366 = vpack.c.b16 %v1294, %v1285
      %v1367 = vpack.c.b16 %v1295, %v1286
      %v1368 = vpack.c.b16 %v1296, %v1287
      %v1369 = vpack.c.b16 %v1297, %v1288
      %v1370 = vpack.c.b16 %v1298, %v1289
      %v1371 = vpack.c.b16 %v1299, %v1290
      %v1372 = vpack.c.b16 %v1300, %v1291
      %v1373 = vpack.c.b16 %v1301, %v1292
      %v1374 = vpack.c.b16 %v1311, %v1302
      %v1375 = vpack.c.b16 %v1312, %v1303
      %v1376 = vpack.c.b16 %v1313, %v1304
      %v1377 = vpack.c.b16 %v1314, %v1305
      %v1378 = vpack.c.b16 %v1315, %v1306
      %v1379 = vpack.c.b16 %v1316, %v1307
      %v1380 = vpack.c.b16 %v1317, %v1308
      %v1381 = vpack.c.b16 %v1318, %v1309
      %v1382 = vpack.c.b16 %v1319, %v1310
      %v1383 = vpack.c.b16 %v1329, %v1320
      %v1384 = vpack.c.b16 %v1330, %v1321
      %v1385 = vpack.c.b16 %v1331, %v1322
      %v1386 = vpack.c.b16 %v1332, %v1323
      %v1387 = vpack.c.b16 %v1333, %v1324
      %v1388 = vpack.c.b16 %v1334, %v1325
      %v1389 = vpack.c.b16 %v1335, %v1326
      %v1390 = vpack.c.b16 %v1336, %v1327
      %v1391 = vpack.c.b16 %v1337, %v1328
      %v1392 = vpack.c.b16 %v1347, %v1338
      %v1393 = vpack.c.b16 %v1348, %v1339
      %v1394 = vpack.c.b16 %v1349, %v1340
      %v1395 = vpack.c.b16 %v1350, %v1341
      %v1396 = vpack.c.b16 %v1351, %v1342
      %v1397 = vpack.c.b16 %v1352, %v1343
      %v1398 = vpack.c.b16 %v1353, %v1344
      %v1399 = vpack.c.b16 %v1354, %v1345
      %v1400 = vpack.c.b16 %v1355, %v1346
      %v1401 = vpack.c.b16 %v1356, %v1356
      %v1402 = vpack.c.b16 %v1357, %v1357
      %v1403 = vpack.c.b16 %v1358, %v1358
      %v1404 = vpack.c.b16 %v1359, %v1359
      %v1405 = vpack.c.b16 %v1360, %v1360
      %v1406 = vpack.c.b16 %v1361, %v1361
      %v1407 = vpack.c.b16 %v1362, %v1362
      %v1408 = vpack.c.b16 %v1363, %v1363
      %v1409 = vpack.c.b16 %v1364, %v1364
      %v1599 = vunpack.c.l.b16 %v1095
      %v1600 = vunpack.c.l.b16 %v1096
      %v1601 = vunpack.c.l.b16 %v1097
      %v1602 = vunpack.c.l.b16 %v1098
      %v1603 = vunpack.c.l.b16 %v1099
      %v1604 = vunpack.c.l.b16 %v1100
      %v1605 = vunpack.c.l.b16 %v1101
      %v1606 = vunpack.c.l.b16 %v1102
      %v1607 = vunpack.c.l.b16 %v1103
      %v1608 = vunpack.c.l.b16 %v1104
      %v1609 = vunpack.c.l.b16 %v1105
      %v1610 = vunpack.c.l.b16 %v1106
      %v1611 = vunpack.c.l.b16 %v1107
      %v1612 = vunpack.c.l.b16 %v1108
      %v1613 = vunpack.c.l.b16 %v1109
      %v1614 = vunpack.c.l.b16 %v1110
      %v1615 = vunpack.c.l.b16 %v1111
      %v1616 = vunpack.c.l.b16 %v1112
      %v1617 = vunpack.c.l.b16 %v1113
      %v1618 = vunpack.c.l.b16 %v1114
      %v1619 = vunpack.c.l.b16 %v1115
      %v1620 = vunpack.c.l.b16 %v1116
      %v1621 = vunpack.c.l.b16 %v1117
      %v1622 = vunpack.c.l.b16 %v1118
      %v1623 = vunpack.c.l.b16 %v1119
      %v1624 = vunpack.c.l.b16 %v1120
      %v1625 = vunpack.c.l.b16 %v1121
      %v1626 = vunpack.c.l.b16 %v1122
      %v1627 = vunpack.c.l.b16 %v1123
      %v1628 = vunpack.c.l.b16 %v1124
      %v1629 = vunpack.c.l.b16 %v1125
      %v1630 = vunpack.c.l.b16 %v1126
      %v1631 = vunpack.c.l.b16 %v1127
      %v1632 = vunpack.c.l.b16 %v1128
      %v1633 = vunpack.c.l.b16 %v1129
      %v1634 = vunpack.c.l.b16 %v1130
      %v1635 = vunpack.c.l.b16 %v1131
      %v1636 = vunpack.c.l.b16 %v1132
      %v1637 = vunpack.c.l.b16 %v1133
      %v1638 = vunpack.c.l.b16 %v1134
      %v1639 = vunpack.c.l.b16 %v1135
      %v1640 = vunpack.c.l.b16 %v1136
      %v1641 = vunpack.c.l.b16 %v1137
      %v1642 = vunpack.c.l.b16 %v1138
      %v1643 = vunpack.c.l.b16 %v1139
      %v1644 = vunpack.c.l.b16 %v1140
      %v1645 = vunpack.c.l.b16 %v1141
      %v1646 = vunpack.c.l.b16 %v1142
      %v1647 = vunpack.c.l.b16 %v1143
      %v1648 = vunpack.c.l.b16 %v1144
      %v1649 = vunpack.c.l.b16 %v1145
      %v1650 = vunpack.c.l.b16 %v1146
      %v1651 = vunpack.c.l.b16 %v1147
      %v1652 = vunpack.c.l.b16 %v1148
      %v1653 = vunpack.c.l.b16 %v1149
      %v1654 = vunpack.c.l.b16 %v1150
      %v1655 = vunpack.c.l.b16 %v1151
      %v1656 = vunpack.c.l.b16 %v1152
      %v1657 = vunpack.c.l.b16 %v1153
      %v1658 = vunpack.c.l.b16 %v1154
      %v1659 = vunpack.c.l.b16 %v1155
      %v1660 = vunpack.c.l.b16 %v1156
      %v1661 = vunpack.c.l.b16 %v1157
      %v1662 = vunpack.c.l.b16 %v1158
      %v1663 = vunpack.c.l.b16 %v1159
      %v1664 = vunpack.c.l.b16 %v1160
      %v1665 = vunpack.c.l.b16 %v1161
      %v1666 = vunpack.c.l.b16 %v1162
      %v1667 = vunpack.c.l.b16 %v1163
      %v1668 = vunpack.c.l.b16 %v1164
      %v1669 = vunpack.c.l.b16 %v1165
      %v1670 = vunpack.c.l.b16 %v1166
      %v1671 = vunpack.c.l.b16 %v1167
      %v1672 = vunpack.c.l.b16 %v1168
      %v1673 = vunpack.c.l.b16 %v1169
      %v1674 = vunpack.c.l.b16 %v1170
      %v1675 = vunpack.c.l.b16 %v1171
      %v1676 = vunpack.c.l.b16 %v1172
      %v1677 = vunpack.c.l.b16 %v1173
      %v1678 = vunpack.c.l.b16 %v1174
      %v1679 = vunpack.c.l.b16 %v1175
      %v1680 = vunpack.c.l.b16 %v1176
      %v1681 = vunpack.c.l.b16 %v1177
      %v1682 = vunpack.c.l.b16 %v1178
      %v1683 = vunpack.c.l.b16 %v1179
      %v1684 = vunpack.c.l.b16 %v1180
      %v1685 = vunpack.c.l.b16 %v1181
      %v1686 = vunpack.c.l.b16 %v1182
      %v1687 = vunpack.c.l.b16 %v1183
      %v1688 = vunpack.c.l.b16 %v1184
      %v1689 = vunpack.c.l.b16 %v1185
      %v1690 = vunpack.c.l.b16 %v1186
      %v1691 = vunpack.c.l.b16 %v1187
      %v1692 = vunpack.c.l.b16 %v1188
      %v1693 = vunpack.c.l.b16 %v1189
      %v1694 = vunpack.c.l.b16 %v1190
      %v1695 = vunpack.c.l.b16 %v1191
      %v1696 = vunpack.c.l.b16 %v1192
      %v1697 = vunpack.c.l.b16 %v1193
      %v1698 = vunpack.c.l.b16 %v1194
      %v1699 = vunpack.c.l.b16 %v1195
      %v1700 = vunpack.c.l.b16 %v1196
      %v1701 = vunpack.c.l.b16 %v1197
      %v1702 = vunpack.c.l.b16 %v1198
      %v1703 = vunpack.c.l.b16 %v1199
      %v1704 = vunpack.c.l.b16 %v1200
      %v1705 = vunpack.c.l.b16 %v1201
      %v1706 = vunpack.c.l.b16 %v1202
      %v1707 = vunpack.c.l.b16 %v1203
      %v1708 = vunpack.c.l.b16 %v1204
      %v1709 = vunpack.c.l.b16 %v1205
      %v1710 = vunpack.c.l.b16 %v1206
      %v1711 = vunpack.c.l.b16 %v1207
      %v1712 = vunpack.c.l.b16 %v1208
      %v1713 = vunpack.c.l.b16 %v1209
      %v1714 = vunpack.c.l.b16 %v1210
      %v1715 = vunpack.c.l.b16 %v1211
      %v1716 = vunpack.c.l.b16 %v1212
      %v1717 = vunpack.c.l.b16 %v1213
      %v1718 = vunpack.c.l.b16 %v1214
      %v1719 = vunpack.c.l.b16 %v1215
      %v1720 = vunpack.c.l.b16 %v1216
      %v1721 = vunpack.c.l.b16 %v1217
      %v1722 = vunpack.c.l.b16 %v1218
      %v1723 = vunpack.c.l.b16 %v1219
      %v1724 = vunpack.c.l.b16 %v1220
      %v1725 = vunpack.c.l.b16 %v1221
      %v1726 = vunpack.c.l.b16 %v1222
      %v1727 = vunpack.c.l.b16 %v1223
      %v1728 = vunpack.c.l.b16 %v1224
      %v1729 = vunpack.c.l.b16 %v1225
      %v1730 = vunpack.c.l.b16 %v1226
      %v1731 = vunpack.c.l.b16 %v1227
      %v1732 = vunpack.c.l.b16 %v1228
      %v1733 = vunpack.c.l.b16 %v1229
      %v1734 = vunpack.c.l.b16 %v1230
      %v1735 = vunpack.c.l.b16 %v1231
      %v1736 = vunpack.c.l.b16 %v1232
      %v1737 = vunpack.c.l.b16 %v1233
      %v1738 = vunpack.c.l.b16 %v1234
      %v1739 = vunpack.c.l.b16 %v1235
      %v1740 = vunpack.c.l.b16 %v1236
      %v1741 = vunpack.c.l.b16 %v1237
      %v1742 = vunpack.c.l.b16 %v1238
      %v1743 = vpack.c.b16 %v1600, %v1599
      %v1744 = vpack.c.b16 %v1602, %v1601
      %v1745 = vpack.c.b16 %v1604, %v1603
      %v1746 = vpack.c.b16 %v1606, %v1605
      %v1747 = vpack.c.b16 %v1608, %v1607
      %v1748 = vpack.c.b16 %v1610, %v1609
      %v1749 = vpack.c.b16 %v1612, %v1611
      %v1750 = vpack.c.b16 %v1614, %v1613
      %v1751 = vpack.c.b16 %v1616, %v1615
      %v1752 = vpack.c.b16 %v1618, %v1617
      %v1753 = vpack.c.b16 %v1620, %v1619
      %v1754 = vpack.c.b16 %v1622, %v1621
      %v1755 = vpack.c.b16 %v1624, %v1623
      %v1756 = vpack.c.b16 %v1626, %v1625
      %v1757 = vpack.c.b16 %v1628, %v1627
      %v1758 = vpack.c.b16 %v1630, %v1629
      %v1759 = vpack.c.b16 %v1632, %v1631
      %v1760 = vpack.c.b16 %v1634, %v1633
      %v1761 = vpack.c.b16 %v1636, %v1635
      %v1762 = vpack.c.b16 %v1638, %v1637
      %v1763 = vpack.c.b16 %v1640, %v1639
      %v1764 = vpack.c.b16 %v1642, %v1641
      %v1765 = vpack.c.b16 %v1644, %v1643
      %v1766 = vpack.c.b16 %v1646, %v1645
      %v1767 = vpack.c.b16 %v1648, %v1647
      %v1768 = vpack.c.b16 %v1650, %v1649
      %v1769 = vpack.c.b16 %v1652, %v1651
      %v1770 = vpack.c.b16 %v1654, %v1653
      %v1771 = vpack.c.b16 %v1656, %v1655
      %v1772 = vpack.c.b16 %v1658, %v1657
      %v1773 = vpack.c.b16 %v1660, %v1659
      %v1774 = vpack.c.b16 %v1662, %v1661
      %v1775 = vpack.c.b16 %v1664, %v1663
      %v1776 = vpack.c.b16 %v1666, %v1665
      %v1777 = vpack.c.b16 %v1668, %v1667
      %v1778 = vpack.c.b16 %v1670, %v1669
      %v1779 = vpack.c.b16 %v1672, %v1671
      %v1780 = vpack.c.b16 %v1674, %v1673
      %v1781 = vpack.c.b16 %v1676, %v1675
      %v1782 = vpack.c.b16 %v1678, %v1677
      %v1783 = vpack.c.b16 %v1680, %v1679
      %v1784 = vpack.c.b16 %v1682, %v1681
      %v1785 = vpack.c.b16 %v1684, %v1683
      %v1786 = vpack.c.b16 %v1686, %v1685
      %v1787 = vpack.c.b16 %v1688, %v1687
      %v1788 = vpack.c.b16 %v1690, %v1689
      %v1789 = vpack.c.b16 %v1692, %v1691
      %v1790 = vpack.c.b16 %v1694, %v1693
      %v1791 = vpack.c.b16 %v1696, %v1695
      %v1792 = vpack.c.b16 %v1698, %v1697
      %v1793 = vpack.c.b16 %v1700, %v1699
      %v1794 = vpack.c.b16 %v1702, %v1701
      %v1795 = vpack.c.b16 %v1704, %v1703
      %v1796 = vpack.c.b16 %v1706, %v1705
      %v1797 = vpack.c.b16 %v1708, %v1707
      %v1798 = vpack.c.b16 %v1710, %v1709
      %v1799 = vpack.c.b16 %v1712, %v1711
      %v1800 = vpack.c.b16 %v1714, %v1713
      %v1801 = vpack.c.b16 %v1716, %v1715
      %v1802 = vpack.c.b16 %v1718, %v1717
      %v1803 = vpack.c.b16 %v1720, %v1719
      %v1804 = vpack.c.b16 %v1722, %v1721
      %v1805 = vpack.c.b16 %v1724, %v1723
      %v1806 = vpack.c.b16 %v1726, %v1725
      %v1807 = vpack.c.b16 %v1728, %v1727
      %v1808 = vpack.c.b16 %v1730, %v1729
      %v1809 = vpack.c.b16 %v1732, %v1731
      %v1810 = vpack.c.b16 %v1734, %v1733
      %v1811 = vpack.c.b16 %v1736, %v1735
      %v1812 = vpack.c.b16 %v1738, %v1737
      %v1813 = vpack.c.b16 %v1740, %v1739
      %v1814 = vpack.c.b16 %v1742, %v1741
      %1887 = vmatprep.subr.bf16.mxu0 0
      %1888 = vmatpush1.bf16.msra.mxu0 %v1743
      %1889 = vmatprep.subr.bf16.mxu0 0
      %1890 = vmatpush1.bf16.msra.mxu0 %v1744
      %1891 = vmatprep.subr.bf16.mxu0 0
      %1892 = vmatpush1.bf16.msra.mxu0 %v1745
      %1893 = vmatprep.subr.bf16.mxu0 0
      %1894 = vmatpush1.bf16.msra.mxu0 %v1746
      %1895 = vmatprep.subr.bf16.mxu0 0
      %1896 = vmatpush1.bf16.msra.mxu0 %v1747
      %1897 = vmatprep.subr.bf16.mxu0 0
      %1898 = vmatpush1.bf16.msra.mxu0 %v1748
      %1899 = vmatprep.subr.bf16.mxu0 0
      %1900 = vmatpush1.bf16.msra.mxu0 %v1749
      %1901 = vmatprep.subr.bf16.mxu0 0
      %1902 = vmatpush1.bf16.msra.mxu0 %v1750
      %1903 = vmatprep.subr.bf16.mxu0 0
      %1904 = vmatpush1.bf16.msra.mxu0 %v1751
      %1905 = vmatprep.subr.bf16.mxu0 0
      %1906 = vmatpush1.bf16.msra.mxu0 %v1752
      %1907 = vmatprep.subr.bf16.mxu0 0
      %1908 = vmatpush1.bf16.msra.mxu0 %v1753
      %1909 = vmatprep.subr.bf16.mxu0 0
      %1910 = vmatpush1.bf16.msra.mxu0 %v1754
      %1911 = vmatprep.subr.bf16.mxu0 0
      %1912 = vmatpush1.bf16.msra.mxu0 %v1755
      %1913 = vmatprep.subr.bf16.mxu0 0
      %1914 = vmatpush1.bf16.msra.mxu0 %v1756
      %1915 = vmatprep.subr.bf16.mxu0 0
      %1916 = vmatpush1.bf16.msra.mxu0 %v1757
      %1917 = vmatprep.subr.bf16.mxu0 0
      %1918 = vmatpush1.bf16.msra.mxu0 %v1758
      %1919 = vmatprep.mubr.bf16.mxu0 %v1366
      %1920 = vmatmul.mubr.bf16.gmra.mrb[0].mxu0 %v1365
      %v1921 = vpop.f32.mrb[0].mxu0
      %v1922 = vadd.f32 0.0, %v1921
      %v1923 = vpop.f32.mrb[0].mxu0
      %v1924 = vpop.f32.mrb[0].mxu0
      %v1925 = vadd.f32 0.0, %v1924
      %v1926 = vpop.f32.mrb[0].mxu0
      %1927 = vmatprep.mubr.bf16.mxu0 %v1375
      %1928 = vmatmul.mubr.bf16.gmra.mrb[0].mxu0 %v1374
      %v1929 = vpop.f32.mrb[0].mxu0
      %v1930 = vadd.f32 0.0, %v1929
      %v1931 = vpop.f32.mrb[0].mxu0
      %v1932 = vpop.f32.mrb[0].mxu0
      %v1933 = vadd.f32 0.0, %v1932
      %v1934 = vpop.f32.mrb[0].mxu0
      %1935 = vmatprep.mubr.bf16.mxu0 %v1384
      %1936 = vmatmul.mubr.bf16.gmra.mrb[0].mxu0 %v1383
      %v1937 = vpop.f32.mrb[0].mxu0
      %v1938 = vadd.f32 0.0, %v1937
      %v1939 = vpop.f32.mrb[0].mxu0
      %v1940 = vpop.f32.mrb[0].mxu0
      %v1941 = vadd.f32 0.0, %v1940
      %v1942 = vpop.f32.mrb[0].mxu0
      %1943 = vmatprep.mubr.bf16.mxu0 %v1393
      %1944 = vmatmul.mubr.bf16.gmra.mrb[0].mxu0 %v1392
      %v1945 = vpop.f32.mrb[0].mxu0
      %v1946 = vadd.f32 0.0, %v1945
      %v1947 = vpop.f32.mrb[0].mxu0
      %v1948 = vpop.f32.mrb[0].mxu0
      %v1949 = vadd.f32 0.0, %v1948
      %v1950 = vpop.f32.mrb[0].mxu0
      %1951 = vmatprep.mubr.bf16.mxu0 %v1402
      %1952 = vmatmul.mubr.bf16.gmra.mrb[0].mxu0 %v1401
      %v1953 = vpop.f32.mrb[0].mxu0
      %v1954 = vadd.f32 0.0, %v1953
      %v1955 = vpop.f32.mrb[0].mxu0
      %v1956 = vpop.f32.mrb[0].mxu0
      %v1957 = vpop.f32.mrb[0].mxu0
      %1958 = vdwg.mxu0
      %1959 = vmatprep.subr.bf16.mxu0 0
      %1960 = vmatpush1.bf16.msra.mxu0 %v1759
      %1961 = vmatprep.subr.bf16.mxu0 0
      %1962 = vmatpush1.bf16.msra.mxu0 %v1760
      %1963 = vmatprep.subr.bf16.mxu0 0
      %1964 = vmatpush1.bf16.msra.mxu0 %v1761
      %1965 = vmatprep.subr.bf16.mxu0 0
      %1966 = vmatpush1.bf16.msra.mxu0 %v1762
      %1967 = vmatprep.subr.bf16.mxu0 0
      %1968 = vmatpush1.bf16.msra.mxu0 %v1763
      %1969 = vmatprep.subr.bf16.mxu0 0
      %1970 = vmatpush1.bf16.msra.mxu0 %v1764
      %1971 = vmatprep.subr.bf16.mxu0 0
      %1972 = vmatpush1.bf16.msra.mxu0 %v1765
      %1973 = vmatprep.subr.bf16.mxu0 0
      %1974 = vmatpush1.bf16.msra.mxu0 %v1766
      %1975 = vmatprep.subr.bf16.mxu0 0
      %1976 = vmatpush1.bf16.msra.mxu0 %v1767
      %1977 = vmatprep.subr.bf16.mxu0 0
      %1978 = vmatpush1.bf16.msra.mxu0 %v1768
      %1979 = vmatprep.subr.bf16.mxu0 0
      %1980 = vmatpush1.bf16.msra.mxu0 %v1769
      %1981 = vmatprep.subr.bf16.mxu0 0
      %1982 = vmatpush1.bf16.msra.mxu0 %v1770
      %1983 = vmatprep.subr.bf16.mxu0 0
      %1984 = vmatpush1.bf16.msra.mxu0 %v1771
      %1985 = vmatprep.subr.bf16.mxu0 0
      %1986 = vmatpush1.bf16.msra.mxu0 %v1772
      %1987 = vmatprep.subr.bf16.mxu0 0
      %1988 = vmatpush1.bf16.msra.mxu0 %v1773
      %1989 = vmatprep.subr.bf16.mxu0 0
      %1990 = vmatpush1.bf16.msra.mxu0 %v1774
      %1991 = vmatprep.mubr.bf16.mxu0 %v1368
      %1992 = vmatmul.mubr.bf16.gmra.mrb[0].mxu0 %v1367
      %v1993 = vpop.f32.mrb[0].mxu0
      %v1994 = vadd.f32 %v1922, %v1993
      %v1995 = vpop.f32.mrb[0].mxu0
      %v1996 = vpop.f32.mrb[0].mxu0
      %v1997 = vadd.f32 %v1925, %v1996
      %v1998 = vpop.f32.mrb[0].mxu0
      %1999 = vmatprep.mubr.bf16.mxu0 %v1377
      %2000 = vmatmul.mubr.bf16.gmra.mrb[0].mxu0 %v1376
      %v2001 = vpop.f32.mrb[0].mxu0
      %v2002 = vadd.f32 %v1930, %v2001
      %v2003 = vpop.f32.mrb[0].mxu0
      %v2004 = vpop.f32.mrb[0].mxu0
      %v2005 = vadd.f32 %v1933, %v2004
      %v2006 = vpop.f32.mrb[0].mxu0
      %2007 = vmatprep.mubr.bf16.mxu0 %v1386
      %2008 = vmatmul.mubr.bf16.gmra.mrb[0].mxu0 %v1385
      %v2009 = vpop.f32.mrb[0].mxu0
      %v2010 = vadd.f32 %v1938, %v2009
      %v2011 = vpop.f32.mrb[0].mxu0
      %v2012 = vpop.f32.mrb[0].mxu0
      %v2013 = vadd.f32 %v1941, %v2012
      %v2014 = vpop.f32.mrb[0].mxu0
      %2015 = vmatprep.mubr.bf16.mxu0 %v1395
      %2016 = vmatmul.mubr.bf16.gmra.mrb[0].mxu0 %v1394
      %v2017 = vpop.f32.mrb[0].mxu0
      %v2018 = vadd.f32 %v1946, %v2017
      %v2019 = vpop.f32.mrb[0].mxu0
      %v2020 = vpop.f32.mrb[0].mxu0
      %v2021 = vadd.f32 %v1949, %v2020
      %v2022 = vpop.f32.mrb[0].mxu0
      %2023 = vmatprep.mubr.bf16.mxu0 %v1404
      %2024 = vmatmul.mubr.bf16.gmra.mrb[0].mxu0 %v1403
      %v2025 = vpop.f32.mrb[0].mxu0
      %v2026 = vadd.f32 %v1954, %v2025
      %v2027 = vpop.f32.mrb[0].mxu0
      %v2028 = vpop.f32.mrb[0].mxu0
      %v2029 = vpop.f32.mrb[0].mxu0
      %2030 = vdwg.mxu0
      %2031 = vmatprep.subr.bf16.mxu0 0
      %2032 = vmatpush1.bf16.msra.mxu0 %v1775
      %2033 = vmatprep.subr.bf16.mxu0 0
      %2034 = vmatpush1.bf16.msra.mxu0 %v1776
      %2035 = vmatprep.subr.bf16.mxu0 0
      %2036 = vmatpush1.bf16.msra.mxu0 %v1777
      %2037 = vmatprep.subr.bf16.mxu0 0
      %2038 = vmatpush1.bf16.msra.mxu0 %v1778
      %2039 = vmatprep.subr.bf16.mxu0 0
      %2040 = vmatpush1.bf16.msra.mxu0 %v1779
      %2041 = vmatprep.subr.bf16.mxu0 0
      %2042 = vmatpush1.bf16.msra.mxu0 %v1780
      %2043 = vmatprep.subr.bf16.mxu0 0
      %2044 = vmatpush1.bf16.msra.mxu0 %v1781
      %2045 = vmatprep.subr.bf16.mxu0 0
      %2046 = vmatpush1.bf16.msra.mxu0 %v1782
      %2047 = vmatprep.subr.bf16.mxu0 0
      %2048 = vmatpush1.bf16.msra.mxu0 %v1783
      %2049 = vmatprep.subr.bf16.mxu0 0
      %2050 = vmatpush1.bf16.msra.mxu0 %v1784
      %2051 = vmatprep.subr.bf16.mxu0 0
      %2052 = vmatpush1.bf16.msra.mxu0 %v1785
      %2053 = vmatprep.subr.bf16.mxu0 0
      %2054 = vmatpush1.bf16.msra.mxu0 %v1786
      %2055 = vmatprep.subr.bf16.mxu0 0
      %2056 = vmatpush1.bf16.msra.mxu0 %v1787
      %2057 = vmatprep.subr.bf16.mxu0 0
      %2058 = vmatpush1.bf16.msra.mxu0 %v1788
      %2059 = vmatprep.subr.bf16.mxu0 0
      %2060 = vmatpush1.bf16.msra.mxu0 %v1789
      %2061 = vmatprep.subr.bf16.mxu0 0
      %2062 = vmatpush1.bf16.msra.mxu0 %v1790
      %2063 = vmatprep.mubr.bf16.mxu0 %v1370
      %2064 = vmatmul.mubr.bf16.gmra.mrb[0].mxu0 %v1369
      %v2065 = vpop.f32.mrb[0].mxu0
      %v2066 = vadd.f32 %v1994, %v2065
      %v2067 = vpop.f32.mrb[0].mxu0
      %v2068 = vpop.f32.mrb[0].mxu0
      %v2069 = vadd.f32 %v1997, %v2068
      %v2070 = vpop.f32.mrb[0].mxu0
      %2071 = vmatprep.mubr.bf16.mxu0 %v1379
      %2072 = vmatmul.mubr.bf16.gmra.mrb[0].mxu0 %v1378
      %v2073 = vpop.f32.mrb[0].mxu0
      %v2074 = vadd.f32 %v2002, %v2073
      %v2075 = vpop.f32.mrb[0].mxu0
      %v2076 = vpop.f32.mrb[0].mxu0
      %v2077 = vadd.f32 %v2005, %v2076
      %v2078 = vpop.f32.mrb[0].mxu0
      %2079 = vmatprep.mubr.bf16.mxu0 %v1388
      %2080 = vmatmul.mubr.bf16.gmra.mrb[0].mxu0 %v1387
      %v2081 = vpop.f32.mrb[0].mxu0
      %v2082 = vadd.f32 %v2010, %v2081
      %v2083 = vpop.f32.mrb[0].mxu0
      %v2084 = vpop.f32.mrb[0].mxu0
      %v2085 = vadd.f32 %v2013, %v2084
      %v2086 = vpop.f32.mrb[0].mxu0
      %2087 = vmatprep.mubr.bf16.mxu0 %v1397
      %2088 = vmatmul.mubr.bf16.gmra.mrb[0].mxu0 %v1396
      %v2089 = vpop.f32.mrb[0].mxu0
      %v2090 = vadd.f32 %v2018, %v2089
      %v2091 = vpop.f32.mrb[0].mxu0
      %v2092 = vpop.f32.mrb[0].mxu0
      %v2093 = vadd.f32 %v2021, %v2092
      %v2094 = vpop.f32.mrb[0].mxu0
      %2095 = vmatprep.mubr.bf16.mxu0 %v1406
      %2096 = vmatmul.mubr.bf16.gmra.mrb[0].mxu0 %v1405
      %v2097 = vpop.f32.mrb[0].mxu0
      %v2098 = vadd.f32 %v2026, %v2097
      %v2099 = vpop.f32.mrb[0].mxu0
      %v2100 = vpop.f32.mrb[0].mxu0
      %v2101 = vpop.f32.mrb[0].mxu0
      %2102 = vdwg.mxu0
      %2103 = vmatprep.subr.bf16.mxu0 0
      %2104 = vmatpush1.bf16.msra.mxu0 %v1791
      %2105 = vmatprep.subr.bf16.mxu0 0
      %2106 = vmatpush1.bf16.msra.mxu0 %v1792
      %2107 = vmatprep.subr.bf16.mxu0 0
      %2108 = vmatpush1.bf16.msra.mxu0 %v1793
      %2109 = vmatprep.subr.bf16.mxu0 0
      %2110 = vmatpush1.bf16.msra.mxu0 %v1794
      %2111 = vmatprep.subr.bf16.mxu0 0
      %2112 = vmatpush1.bf16.msra.mxu0 %v1795
      %2113 = vmatprep.subr.bf16.mxu0 0
      %2114 = vmatpush1.bf16.msra.mxu0 %v1796
      %2115 = vmatprep.subr.bf16.mxu0 0
      %2116 = vmatpush1.bf16.msra.mxu0 %v1797
      %2117 = vmatprep.subr.bf16.mxu0 0
      %2118 = vmatpush1.bf16.msra.mxu0 %v1798
      %2119 = vmatprep.subr.bf16.mxu0 0
      %2120 = vmatpush1.bf16.msra.mxu0 %v1799
      %2121 = vmatprep.subr.bf16.mxu0 0
      %2122 = vmatpush1.bf16.msra.mxu0 %v1800
      %2123 = vmatprep.subr.bf16.mxu0 0
      %2124 = vmatpush1.bf16.msra.mxu0 %v1801
      %2125 = vmatprep.subr.bf16.mxu0 0
      %2126 = vmatpush1.bf16.msra.mxu0 %v1802
      %2127 = vmatprep.subr.bf16.mxu0 0
      %2128 = vmatpush1.bf16.msra.mxu0 %v1803
      %2129 = vmatprep.subr.bf16.mxu0 0
      %2130 = vmatpush1.bf16.msra.mxu0 %v1804
      %2131 = vmatprep.subr.bf16.mxu0 0
      %2132 = vmatpush1.bf16.msra.mxu0 %v1805
      %2133 = vmatprep.subr.bf16.mxu0 0
      %2134 = vmatpush1.bf16.msra.mxu0 %v1806
      %2135 = vmatprep.mubr.bf16.mxu0 %v1372
      %2136 = vmatmul.mubr.bf16.gmra.mrb[0].mxu0 %v1371
      %v2137 = vpop.f32.mrb[0].mxu0
      %v2138 = vadd.f32 %v2066, %v2137
      %v2139 = vpop.f32.mrb[0].mxu0
      %v2140 = vpop.f32.mrb[0].mxu0
      %v2141 = vadd.f32 %v2069, %v2140
      %v2142 = vpop.f32.mrb[0].mxu0
      %2143 = vmatprep.mubr.bf16.mxu0 %v1381
      %2144 = vmatmul.mubr.bf16.gmra.mrb[0].mxu0 %v1380
      %v2145 = vpop.f32.mrb[0].mxu0
      %v2146 = vadd.f32 %v2074, %v2145
      %v2147 = vpop.f32.mrb[0].mxu0
      %v2148 = vpop.f32.mrb[0].mxu0
      %v2149 = vadd.f32 %v2077, %v2148
      %v2150 = vpop.f32.mrb[0].mxu0
      %2151 = vmatprep.mubr.bf16.mxu0 %v1390
      %2152 = vmatmul.mubr.bf16.gmra.mrb[0].mxu0 %v1389
      %v2153 = vpop.f32.mrb[0].mxu0
      %v2154 = vadd.f32 %v2082, %v2153
      %v2155 = vpop.f32.mrb[0].mxu0
      %v2156 = vpop.f32.mrb[0].mxu0
      %v2157 = vadd.f32 %v2085, %v2156
      %v2158 = vpop.f32.mrb[0].mxu0
      %2159 = vmatprep.mubr.bf16.mxu0 %v1399
      %2160 = vmatmul.mubr.bf16.gmra.mrb[0].mxu0 %v1398
      %v2161 = vpop.f32.mrb[0].mxu0
      %v2162 = vadd.f32 %v2090, %v2161
      %v2163 = vpop.f32.mrb[0].mxu0
      %v2164 = vpop.f32.mrb[0].mxu0
      %v2165 = vadd.f32 %v2093, %v2164
      %v2166 = vpop.f32.mrb[0].mxu0
      %2167 = vmatprep.mubr.bf16.mxu0 %v1408
      %2168 = vmatmul.mubr.bf16.gmra.mrb[0].mxu0 %v1407
      %v2169 = vpop.f32.mrb[0].mxu0
      %v2170 = vadd.f32 %v2098, %v2169
      %v2171 = vpop.f32.mrb[0].mxu0
      %v2172 = vpop.f32.mrb[0].mxu0
      %v2173 = vpop.f32.mrb[0].mxu0
      %2174 = vdwg.mxu0
      %2175 = vmatprep.subr.bf16.mxu0 0
      %2176 = vmatpush1.bf16.msra.mxu0 %v1807
      %2177 = vmatprep.subr.bf16.mxu0 0
      %2178 = vmatpush1.bf16.msra.mxu0 %v1808
      %2179 = vmatprep.subr.bf16.mxu0 0
      %2180 = vmatpush1.bf16.msra.mxu0 %v1809
      %2181 = vmatprep.subr.bf16.mxu0 0
      %2182 = vmatpush1.bf16.msra.mxu0 %v1810
      %2183 = vmatprep.subr.bf16.mxu0 0
      %2184 = vmatpush1.bf16.msra.mxu0 %v1811
      %2185 = vmatprep.subr.bf16.mxu0 0
      %2186 = vmatpush1.bf16.msra.mxu0 %v1812
      %2187 = vmatprep.subr.bf16.mxu0 0
      %2188 = vmatpush1.bf16.msra.mxu0 %v1813
      %2189 = vmatprep.subr.bf16.mxu0 0
      %2190 = vmatpush1.bf16.msra.mxu0 %v1814
      %2191 = vmatprep.subr.bf16.mxu0 0
      %2192 = vmatpush1.bf16.msra.mxu0 0
      %2193 = vmatprep.subr.bf16.mxu0 0
      %2194 = vmatpush1.bf16.msra.mxu0 0
      %2195 = vmatprep.subr.bf16.mxu0 0
      %2196 = vmatpush1.bf16.msra.mxu0 0
      %2197 = vmatprep.subr.bf16.mxu0 0
      %2198 = vmatpush1.bf16.msra.mxu0 0
      %2199 = vmatprep.subr.bf16.mxu0 0
      %2200 = vmatpush1.bf16.msra.mxu0 0
      %2201 = vmatprep.subr.bf16.mxu0 0
      %2202 = vmatpush1.bf16.msra.mxu0 0
      %2203 = vmatprep.subr.bf16.mxu0 0
      %2204 = vmatpush1.bf16.msra.mxu0 0
      %2205 = vmatprep.subr.bf16.mxu0 0
      %2206 = vmatpush1.bf16.msra.mxu0 0
      %2207 = vmatprep.mubr.bf16.mxu0 0
      %2208 = vmatmul.mubr.bf16.gmra.mrb[0].mxu0 %v1373
      %v2209 = vpop.f32.mrb[0].mxu0
      %v2210 = vadd.f32 %v2138, %v2209
      %v2211 = vpop.f32.mrb[0].mxu0
      %v2212 = vpop.f32.mrb[0].mxu0
      %v2213 = vadd.f32 %v2141, %v2212
      %v2214 = vpop.f32.mrb[0].mxu0
      %2215 = vmatprep.mubr.bf16.mxu0 0
      %2216 = vmatmul.mubr.bf16.gmra.mrb[0].mxu0 %v1382
      %v2217 = vpop.f32.mrb[0].mxu0
      %v2218 = vadd.f32 %v2146, %v2217
      %v2219 = vpop.f32.mrb[0].mxu0
      %v2220 = vpop.f32.mrb[0].mxu0
      %v2221 = vadd.f32 %v2149, %v2220
      %v2222 = vpop.f32.mrb[0].mxu0
      %2223 = vmatprep.mubr.bf16.mxu0 0
      %2224 = vmatmul.mubr.bf16.gmra.mrb[0].mxu0 %v1391
      %v2225 = vpop.f32.mrb[0].mxu0
      %v2226 = vadd.f32 %v2154, %v2225
      %v2227 = vpop.f32.mrb[0].mxu0
      %v2228 = vpop.f32.mrb[0].mxu0
      %v2229 = vadd.f32 %v2157, %v2228
      %v2230 = vpop.f32.mrb[0].mxu0
      %2231 = vmatprep.mubr.bf16.mxu0 0
      %2232 = vmatmul.mubr.bf16.gmra.mrb[0].mxu0 %v1400
      %v2233 = vpop.f32.mrb[0].mxu0
      %v2234 = vadd.f32 %v2162, %v2233
      %v2235 = vpop.f32.mrb[0].mxu0
      %v2236 = vpop.f32.mrb[0].mxu0
      %v2237 = vadd.f32 %v2165, %v2236
      %v2238 = vpop.f32.mrb[0].mxu0
      %2239 = vmatprep.mubr.bf16.mxu0 0
      %2240 = vmatmul.mubr.bf16.gmra.mrb[0].mxu0 %v1409
      %v2241 = vpop.f32.mrb[0].mxu0
      %v2242 = vadd.f32 %v2170, %v2241
      %v2243 = vpop.f32.mrb[0].mxu0
      %v2244 = vpop.f32.mrb[0].mxu0
      %v2245 = vpop.f32.mrb[0].mxu0
      %2246 = vdwg.mxu0
      %2247 = vadd.xlane.f32.xlu0 %v2210
      %v2248 = vpop.xlane.xlu0 %2247
      %2249 = vadd.xlane.f32.xlu0 %v2213
      %v2250 = vpop.xlane.xlu0 %2249
      %2251 = vadd.xlane.f32.xlu0 %v2218
      %v2252 = vpop.xlane.xlu0 %2251
      %2253 = vadd.xlane.f32.xlu0 %v2221
      %v2254 = vpop.xlane.xlu0 %2253
      %2255 = vadd.xlane.f32.xlu0 %v2226
      %v2256 = vpop.xlane.xlu0 %2255
      %2257 = vadd.xlane.f32.xlu0 %v2229
      %v2258 = vpop.xlane.xlu0 %2257
      %2259 = vadd.xlane.f32.xlu0 %v2234
      %v2260 = vpop.xlane.xlu0 %2259
      %2261 = vadd.xlane.f32.xlu0 %v2237
      %v2262 = vpop.xlane.xlu0 %2261
      %2263 = vadd.xlane.f32.xlu0 %v2242
      %v2264 = vpop.xlane.xlu0 %2263
      %v2265 = vmul.f32 %v2210, %v2210
      %v2266 = vmul.f32 %v2213, %v2213
      %v2267 = vmul.f32 %v2218, %v2218
      %v2268 = vmul.f32 %v2221, %v2221
      %v2269 = vmul.f32 %v2226, %v2226
      %v2270 = vmul.f32 %v2229, %v2229
      %v2271 = vmul.f32 %v2234, %v2234
      %v2272 = vmul.f32 %v2237, %v2237
      %v2273 = vmul.f32 %v2242, %v2242
      %2274 = vadd.xlane.f32.xlu0 %v2265
      %v2275 = vpop.xlane.xlu0 %2274
      %2276 = vadd.xlane.f32.xlu0 %v2266
      %v2277 = vpop.xlane.xlu0 %2276
      %2278 = vadd.xlane.f32.xlu0 %v2267
      %v2279 = vpop.xlane.xlu0 %2278
      %2280 = vadd.xlane.f32.xlu0 %v2268
      %v2281 = vpop.xlane.xlu0 %2280
      %2282 = vadd.xlane.f32.xlu0 %v2269
      %v2283 = vpop.xlane.xlu0 %2282
      %2284 = vadd.xlane.f32.xlu0 %v2270
      %v2285 = vpop.xlane.xlu0 %2284
      %2286 = vadd.xlane.f32.xlu0 %v2271
      %v2287 = vpop.xlane.xlu0 %2286
      %2288 = vadd.xlane.f32.xlu0 %v2272
      %v2289 = vpop.xlane.xlu0 %2288
      %2290 = vadd.xlane.f32.xlu0 %v2273
      %v2291 = vpop.xlane.xlu0 %2290
      %v2292 = vmul.f32 %v2248, 0.125
      %v2293 = vmul.f32 %v2250, 0.125
      %v2294 = vmul.f32 %v2252, 0.125
      %v2295 = vmul.f32 %v2254, 0.125
      %v2296 = vmul.f32 %v2256, 0.125
      %v2297 = vmul.f32 %v2258, 0.125
      %v2298 = vmul.f32 %v2260, 0.125
      %v2299 = vmul.f32 %v2262, 0.125
      %v2300 = vmul.f32 %v2264, 0.125
      %v2301 = vmul.f32 %v2275, 0.125
      %v2302 = vmul.f32 %v2277, 0.125
      %v2303 = vmul.f32 %v2279, 0.125
      %v2304 = vmul.f32 %v2281, 0.125
      %v2305 = vmul.f32 %v2283, 0.125
      %v2306 = vmul.f32 %v2285, 0.125
      %v2307 = vmul.f32 %v2287, 0.125
      %v2308 = vmul.f32 %v2289, 0.125
      %v2309 = vmul.f32 %v2291, 0.125
      %v2310 = vmul.f32 %v2292, %v2292
      %v2311 = vmul.f32 %v2293, %v2293
      %v2312 = vmul.f32 %v2294, %v2294
      %v2313 = vmul.f32 %v2295, %v2295
      %v2314 = vmul.f32 %v2296, %v2296
      %v2315 = vmul.f32 %v2297, %v2297
      %v2316 = vmul.f32 %v2298, %v2298
      %v2317 = vmul.f32 %v2299, %v2299
      %v2318 = vmul.f32 %v2300, %v2300
      %v2319 = vsub.f32 %v2301, %v2310
      %v2320 = vsub.f32 %v2302, %v2311
      %v2321 = vsub.f32 %v2303, %v2312
      %v2322 = vsub.f32 %v2304, %v2313
      %v2323 = vsub.f32 %v2305, %v2314
      %v2324 = vsub.f32 %v2306, %v2315
      %v2325 = vsub.f32 %v2307, %v2316
      %v2326 = vsub.f32 %v2308, %v2317
      %v2327 = vsub.f32 %v2309, %v2318
      %v2328 = vmax.f32 %v2319, 0.0
      %v2329 = vmax.f32 %v2320, 0.0
      %v2330 = vmax.f32 %v2321, 0.0
      %v2331 = vmax.f32 %v2322, 0.0
      %v2332 = vmax.f32 %v2323, 0.0
      %v2333 = vmax.f32 %v2324, 0.0
      %v2334 = vmax.f32 %v2325, 0.0
      %v2335 = vmax.f32 %v2326, 0.0
      %v2336 = vmax.f32 %v2327, 0.0
      %v2337 = vsub.f32 %v2210, %v2292
      %v2338 = vsub.f32 %v2213, %v2293
      %v2339 = vsub.f32 %v2218, %v2294
      %v2340 = vsub.f32 %v2221, %v2295
      %v2341 = vsub.f32 %v2226, %v2296
      %v2342 = vsub.f32 %v2229, %v2297
      %v2343 = vsub.f32 %v2234, %v2298
      %v2344 = vsub.f32 %v2237, %v2299
      %v2345 = vsub.f32 %v2242, %v2300
      %v2346 = vadd.f32 %v2328, 1e-05
      %v2347 = vadd.f32 %v2329, 1e-05
      %v2348 = vadd.f32 %v2330, 1e-05
      %v2349 = vadd.f32 %v2331, 1e-05
      %v2350 = vadd.f32 %v2332, 1e-05
      %v2351 = vadd.f32 %v2333, 1e-05
      %v2352 = vadd.f32 %v2334, 1e-05
      %v2353 = vadd.f32 %v2335, 1e-05
      %v2354 = vadd.f32 %v2336, 1e-05
      %v2355 = vrsqrt.pop %v2346
      %v2356 = vrsqrt.pop %v2347
      %v2357 = vrsqrt.pop %v2348
      %v2358 = vrsqrt.pop %v2349
      %v2359 = vrsqrt.pop %v2350
      %v2360 = vrsqrt.pop %v2351
      %v2361 = vrsqrt.pop %v2352
      %v2362 = vrsqrt.pop %v2353
      %v2363 = vrsqrt.pop %v2354
      %v2364 = vmul.f32 %v2337, %v2355
      %v2365 = vmul.f32 %v2338, %v2356
      %v2366 = vmul.f32 %v2339, %v2357
      %v2367 = vmul.f32 %v2340, %v2358
      %v2368 = vmul.f32 %v2341, %v2359
      %v2369 = vmul.f32 %v2342, %v2360
      %v2370 = vmul.f32 %v2343, %v2361
      %v2371 = vmul.f32 %v2344, %v2362
      %v2372 = vmul.f32 %v2345, %v2363
      %v2373 = vld [vmem:[%s5] sm:$0x1]
      %v2375 = vlaneseq
      %v2376 = vshrl.u32 %v2375, 7
      %v2377 = vsub.s32 0, %v2376
      %v2378 = vrot.slane %v2373, %v2377
      %v2380 = vmul.f32 %v2364, %v2378
      %v2381 = vmul.f32 %v2365, %v2378
      %v2382 = vmul.f32 %v2366, %v2378
      %v2383 = vmul.f32 %v2367, %v2378
      %v2384 = vmul.f32 %v2368, %v2378
      %v2385 = vmul.f32 %v2369, %v2378
      %v2386 = vmul.f32 %v2370, %v2378
      %v2387 = vmul.f32 %v2371, %v2378
      %v2388 = vmul.f32 %v2372, %v2378
      %v2389 = vld [vmem:[%s6] sm:$0x1]
      %v2391 = vlaneseq
      %v2392 = vshrl.u32 %v2391, 7
      %v2393 = vsub.s32 0, %v2392
      %v2394 = vrot.slane %v2389, %v2393
      %v2396 = vadd.f32 %v2380, %v2394
      %v2397 = vadd.f32 %v2381, %v2394
      %v2398 = vadd.f32 %v2382, %v2394
      %v2399 = vadd.f32 %v2383, %v2394
      %v2400 = vadd.f32 %v2384, %v2394
      %v2401 = vadd.f32 %v2385, %v2394
      %v2402 = vadd.f32 %v2386, %v2394
      %v2403 = vadd.f32 %v2387, %v2394
      %v2404 = vadd.f32 %v2388, %v2394
      %2405 = vst [vmem:[%s416] sm:$0xff] %v2396
      %2406 = vst [vmem:[%s416 + $0x8] sm:$0xff] %v2397
      %2407 = vst [vmem:[%s416 + $0x10] sm:$0xff] %v2398
      %2408 = vst [vmem:[%s416 + $0x18] sm:$0xff] %v2399
      %2409 = vst [vmem:[%s416 + $0x20] sm:$0xff] %v2400
      %2410 = vst [vmem:[%s416 + $0x28] sm:$0xff] %v2401
      %2411 = vst [vmem:[%s416 + $0x30] sm:$0xff] %v2402
      %2412 = vst [vmem:[%s416 + $0x38] sm:$0xff] %v2403
      %2413 = vst [vmem:[%s416 + $0x40] sm:$0xff] %v2404
      %p2414 = scmp.lt.s32.totalorder %s22, 1
      %s2415 = scalar_select %p2414, %s22, 1
      %p2416 = scmp.lt.s32.totalorder %s23, 0
      %s2417 = scalar_select %p2416, %s23, 0
      %s2418 = smul.addr %s2417, 9
      %s2419 = smul.addr %s2415, 9
      %s2420 = sadd.s32 %s2418, %s2419
      %s2421 = smul.addr %s2420, 8
      %s2422 = scalar_lea.vmem %s7, %s2421
      // Predicated region
      $region49: #{conv_downsampler.1} parent=47 // pred_check
        %p2423 = pneg %p225
      $region50: #{conv_downsampler.1} parent=47 // pred_check_branch
        %2425 = sbr.rel (%p2423) target = $region52
      $region51: #{conv_downsampler.1} parent=47 // pred_region
        _
      $region52: #{conv_downsampler.1} parent=47 // pred_fallthru
        _
    $region48: #{conv_downsampler.1} parent=5 // pred_fallthru
      _
    %p2426 = scmp.le.s32.totalorder 2, %s13
    // Predicated region
    $region53: #{conv_downsampler.1} parent=5 // pred_check
      %p2427 = pneg %p2426
    $region54: #{conv_downsampler.1} parent=5 // pred_check_branch
      %2429 = sbr.rel (%p2427) target = $region56
    $region55: #{conv_downsampler.1} parent=5 // pred_region
      %s2430 = ssub.s32 %s13, 2
      // Predicated region
      $region57: #{conv_downsampler.1} parent=55 // pred_check
        %p2431 = pneg %p231
      $region58: #{conv_downsampler.1} parent=55 // pred_check_branch
        %2433 = sbr.rel (%p2431) target = $region60
      $region59: #{conv_downsampler.1} parent=55 // pred_region
        %p2434 = scmp.lt.s32.totalorder %s24, 1
        %s2435 = scalar_select %p2434, %s24, 1
        %p2436 = scmp.lt.s32.totalorder %s25, 0
        %s2437 = scalar_select %p2436, %s25, 0
        %s2438 = smul.addr %s2437, 9
        %s2439 = smul.addr %s2435, 9
        %s2440 = sadd.s32 %s2438, %s2439
        %s2441 = smul.addr %s2440, 8
        %s2442 = scalar_lea.vmem %s7, %s2441
      $region60: #{conv_downsampler.1} parent=55 // pred_fallthru
        _
    $region56: #{conv_downsampler.1} parent=5 // pred_fallthru
      _
  $region6: #{conv_downsampler.1} parent=0 // loop_footer
    %s17 = sadd.s32 1, %s13
  $region7: #{conv_downsampler.1} parent=0 // loop_footer_branch
    %12 = sbr.rel target = $region3
  $region8: #{conv_downsampler.1} parent=0 // loop_exit
    _

</llo_original>
